<compile_context>
chip_gen: v7x
topology: tpu7x:2x2x1
jax: 0.10.0
libtpu: 0.0.40
codegen_flags: <defaults>
</compile_context>

<pallas_src>
import math

import jax
import jax.numpy as jnp
from jax.experimental import pallas as pl
from jax.experimental.pallas import tpu as pltpu

FEATURE_DIM = 64      # Config.MODEL.FEATURE_DIM (small synthetic value)
PROJECTION_DIM = 32   # Config.MODEL.PROJECTION_DIM
NUM_CLASSES = 2       # Config.ARCHITECTURE.NUM_CLASSES
LN_EPS = 1e-5

D, P, C = FEATURE_DIM, PROJECTION_DIM, NUM_CLASSES
SLAB_COLS = 3 * D                                  # 192 (widest packed weight)
OUT_W = ((3 * D + 9 + C + 127) // 128) * 128       # lane-dense output slab width

# ----------------------- packed-parameter slab layout ------------------------
_W_LAYOUT = [            # (name, rows, cols) -- packed along rows, from col 0
    ("W1bd", 2 * D, 2 * P),   # block-diag [iW1 0; 0 tW1]   (128, 64)
    ("W2bd", 2 * P, 2 * D),   # block-diag [iW2 0; 0 tW2]   (64, 128)
    ("Wqkv", D, 3 * D),       # fused [Wq*scale | Wk | Wv]  (64, 192)
    ("Wo",   D, D),           # attention output projection (64, 64)
    ("cW1",  2 * D, P),       # classifier layer 1          (128, 32)
    ("cW2",  P, C),           # classifier layer 2          (32, 2)
]
_B_LAYOUT = [            # (name, cols) -- one bias / LN vector per slab row
    ("b1bd", 2 * P), ("b2bd", 2 * D),
    ("ilg", D), ("ilb", D), ("tlg", D), ("tlb", D),
    ("bqkv", 3 * D), ("bo", D), ("alg", D), ("alb", D),
    ("cb1", P), ("clg", P), ("clb", P), ("cb2", C),
    ("ls", 1),                            # logit_scale (scalar)
]


def _build_offsets():
    w_off, r = {}, 0
    for name, rows, cols in _W_LAYOUT:
        w_off[name] = (r, rows, cols)
        r += rows
    b_off = {name: (i, cols) for i, (name, cols) in enumerate(_B_LAYOUT)}
    return w_off, r, b_off, len(_B_LAYOUT)


W_OFF, W_ROWS, B_OFF, B_ROWS = _build_offsets()


# ------------------------------ kernel helpers -------------------------------
def _gelu(x):
    # TODO(synk): nn.GELU() default is exact (erf-based); tanh approximation is
    # used here for robust Mosaic lowering (single EUP push either way).
    c = math.sqrt(2.0 / math.pi)
    return 0.5 * x * (1.0 + jnp.tanh(c * (x + 0.044715 * x * x * x)))


def _layernorm(x, g, b):
    # Fused statistics: E[x] and E[x^2] are independent lane reductions.
    mu = jnp.mean(x, axis=-1, keepdims=True)
    msq = jnp.mean(x * x, axis=-1, keepdims=True)
    var = jnp.maximum(msq - mu * mu, 0.0)
    return (x - mu) * jax.lax.rsqrt(var + LN_EPS) * g + b


def _l2norm(x):
    # F.normalize(dim=-1): x / max(||x||, 1e-12)  ==  x * rsqrt(max(||x||^2, 1e-24))
    ss = jnp.sum(x * x, axis=-1, keepdims=True)
    return x * jax.lax.rsqrt(jnp.maximum(ss, 1e-24))


def _dot(a, b):
    return jnp.dot(a, b, preferred_element_type=jnp.float32)


def _w(w_ref, name):
    r0, rows, cols = W_OFF[name]
    return w_ref[r0:r0 + rows, 0:cols]


def _b(b_ref, name):
    row, cols = B_OFF[name]
    return b_ref[row:row + 1, 0:cols]


# ------------------------------- main kernel ---------------------------------
def _head_kernel(acts_ref, w_ref, b_ref, feat_ref, qn_ref, kn_ref):
    T = acts_ref.shape[1]            # batch tile
    d = D

    # Stack the 3 modality groups along sublanes: (3T, 2D) bf16.
    # Group 0 rows carry [img | 0], groups 1,2 carry [0 | txt] (block-diag layout).
    x2 = jnp.concatenate([acts_ref[0], acts_ref[1], acts_ref[2]], axis=0)

    # TODO(synk): ProjectionHead definition not in the snippet; assumed
    # Linear -> GELU -> Linear -> LayerNorm (dropout = identity at inference).
    # Image + text heads fused via block-diagonal weights: two matmuls total.
    h = _gelu(_dot(x2, _w(w_ref, "W1bd")) + _b(b_ref, "b1bd"))                 # (3T,2P) f32
    y = _dot(h.astype(jnp.bfloat16), _w(w_ref, "W2bd")) + _b(b_ref, "b2bd")    # (3T,2D) f32
    img_p = _layernorm(y[0:T, 0:d], _b(b_ref, "ilg"), _b(b_ref, "ilb"))
    txt_p = _layernorm(y[T:, d:2 * d], _b(b_ref, "tlg"), _b(b_ref, "tlb"))
    tokens = jnp.concatenate([img_p, txt_p], axis=0)                           # (3T,D) f32

    # TODO(synk): CrossModalEncoder definition not in the snippet; assumed
    # single-head self-attention over the 3 modality tokens + residual + LN.
    # Fused Q/K/V: one (3T,D)x(D,3D) matmul; 1/sqrt(D) pre-folded into Wq/bq.
    qkv = _dot(tokens.astype(jnp.bfloat16), _w(w_ref, "Wqkv")) + _b(b_ref, "bqkv")
    q, k, v = qkv[:, 0:d], qkv[:, d:2 * d], qkv[:, 2 * d:3 * d]

    def rot(a, g):   # row block p -> original group (p + g) % 3 (XLU sublane roll)
        return pltpu.roll(a, shift=(3 - g) * T, axis=0)

    k1, k2 = rot(k, 1), rot(k, 2)
    v1, v2 = rot(v, 1), rot(v, 2)

    # All 9 attention scores from 3 full-width multiply + lane-reduce ops.
    s0 = jnp.sum(q * k, axis=-1, keepdims=True)    # key group  i
    s1 = jnp.sum(q * k1, axis=-1, keepdims=True)   # key group (i+1)%3
    s2 = jnp.sum(q * k2, axis=-1, keepdims=True)   # key group (i+2)%3
    m = jnp.maximum(jnp.maximum(s0, s1), s2)
    e0, e1, e2 = jnp.exp(s0 - m), jnp.exp(s1 - m), jnp.exp(s2 - m)
    inv = 1.0 / (e0 + e1 + e2)   # exact; pl.reciprocal(approx) would loosen probs to ~1e-3
    p0, p1, p2 = e0 * inv, e1 * inv, e2 * inv

    ctx = p0 * v + p1 * v1 + p2 * v2                                           # (3T,D)
    attended = _layernorm(
        tokens + _dot(ctx.astype(jnp.bfloat16), _w(w_ref, "Wo")) + _b(b_ref, "bo"),
        _b(b_ref, "alg"), _b(b_ref, "alb"))
    a_img, a_hate, a_ben = attended[0:T], attended[T:2 * T], attended[2 * T:]

    # Attention probs, row-major (query i, key j) -> (T, 9).
    attn_flat = jnp.concatenate(
        [p0[0:T], p1[0:T], p2[0:T],
         p2[T:2 * T], p0[T:2 * T], p1[T:2 * T],
         p1[2 * T:], p2[2 * T:], p0[2 * T:]], axis=-1)

    # Classifier: Linear -> LayerNorm -> GELU -> (Dropout=id) -> Linear.
    cc = jnp.concatenate([a_hate, a_ben], axis=-1)                             # (T,2D)
    hc = _gelu(_layernorm(
        _dot(cc.astype(jnp.bfloat16), _w(w_ref, "cW1")) + _b(b_ref, "cb1"),
        _b(b_ref, "clg"), _b(b_ref, "clb")))
    logits = _dot(hc.astype(jnp.bfloat16), _w(w_ref, "cW2")) + _b(b_ref, "cb2")

    # L2-normalized attended features for the similarity kernel; exp(logit_scale)
    # is folded into the query-side (image) features.
    attended_n = _l2norm(attended)
    ls = jnp.exp(_b(b_ref, "ls"))                                              # (1,1)
    qn_ref[...] = attended_n[0:T] * ls
    kn_ref[0] = attended_n[T:2 * T]
    kn_ref[1] = attended_n[2 * T:]

    # Per-sample outputs in one lane-dense slab, one unmasked store.
    packed = jnp.concatenate([a_img, a_hate, a_ben, attn_flat, logits], axis=-1)
    pad = feat_ref.shape[1] - packed.shape[1]
    if pad:
        packed = jnp.concatenate(
            [packed, jnp.zeros((T, pad), packed.dtype)], axis=-1)
    feat_ref[...] = packed


# ----------------------------- similarity kernel ------------------------------
def _sims_kernel(qn_ref, kn_ref, hs_ref, bs_ref):
    q = qn_ref[...].astype(jnp.bfloat16)        # (TQ, D)  scaled, normalized image
    k_h = kn_ref[0].astype(jnp.bfloat16)        # (TK, D)  normalized hateful text
    k_b = kn_ref[1].astype(jnp.bfloat16)        # (TK, D)  normalized benign text
    dims = (((1,), (1,)), ((), ()))
    hs_ref[...] = jax.lax.dot_general(q, k_h, dims, preferred_element_type=jnp.float32)
    bs_ref[...] = jax.lax.dot_general(q, k_b, dims, preferred_element_type=jnp.float32)


# ------------------------------ parameter init -------------------------------
def xavier_uniform(key, shape):
    fan_in, fan_out = shape
    bound = math.sqrt(6.0 / (fan_in + fan_out))
    return jax.random.uniform(key, shape, jnp.float32, -bound, bound)


def init_params(key):
    """Unpacked parameters mirroring the PyTorch module's trainable heads."""
    ks = iter(jax.random.split(key, 16))
    zeros = lambda n: jnp.zeros((n,), jnp.float32)
    ones = lambda n: jnp.ones((n,), jnp.float32)
    return {
        # image projection head
        "iW1": xavier_uniform(next(ks), (D, P)), "ib1": zeros(P),
        "iW2": xavier_uniform(next(ks), (P, D)), "ib2": zeros(D),
        "ilg": ones(D), "ilb": zeros(D),
        # text projection head (shared for hateful & benign text)
        "tW1": xavier_uniform(next(ks), (D, P)), "tb1": zeros(P),
        "tW2": xavier_uniform(next(ks), (P, D)), "tb2": zeros(D),
        "tlg": ones(D), "tlb": zeros(D),
        # cross-modal single-head attention
        "Wq": xavier_uniform(next(ks), (D, D)), "bq": zeros(D),
        "Wk": xavier_uniform(next(ks), (D, D)), "bk": zeros(D),
        "Wv": xavier_uniform(next(ks), (D, D)), "bv": zeros(D),
        "Wo": xavier_uniform(next(ks), (D, D)), "bo": zeros(D),
        "alg": ones(D), "alb": zeros(D),
        # classifier: Linear(2D,P) + LayerNorm(P) + Linear(P,C)
        "cW1": xavier_uniform(next(ks), (2 * D, P)), "cb1": zeros(P),
        "clg": ones(P), "clb": zeros(P),
        "cW2": xavier_uniform(next(ks), (P, C)), "cb2": zeros(C),
        # logit_scale = log(1/0.07)
        "ls": jnp.full((1,), math.log(1.0 / 0.07), jnp.float32),
    }


def pack_params(p):
    """Pack parameters into one bf16 weight slab + one f32 bias/LN/scalar slab."""
    scale = 1.0 / math.sqrt(FEATURE_DIM)   # attention scale folded into Wq AND bq
    blocks = {
        "W1bd": jnp.zeros((2 * D, 2 * P), jnp.float32)
                   .at[0:D, 0:P].set(p["iW1"]).at[D:2 * D, P:2 * P].set(p["tW1"]),
        "W2bd": jnp.zeros((2 * P, 2 * D), jnp.float32)
                   .at[0:P, 0:D].set(p["iW2"]).at[P:2 * P, D:2 * D].set(p["tW2"]),
        "Wqkv": jnp.concatenate([p["Wq"] * scale, p["Wk"], p["Wv"]], axis=-1),
        "Wo": p["Wo"], "cW1": p["cW1"], "cW2": p["cW2"],
    }
    w = jnp.zeros((W_ROWS, SLAB_COLS), jnp.float32)
    for name, rows, cols in _W_LAYOUT:
        r0 = W_OFF[name][0]
        w = w.at[r0:r0 + rows, 0:cols].set(blocks[name])
    w = w.astype(jnp.bfloat16)              # matmul operands only; math stays f32

    vecs = {
        "b1bd": jnp.concatenate([p["ib1"], p["tb1"]]),
        "b2bd": jnp.concatenate([p["ib2"], p["tb2"]]),
        "ilg": p["ilg"], "ilb": p["ilb"], "tlg": p["tlg"], "tlb": p["tlb"],
        "bqkv": jnp.concatenate([p["bq"] * scale, p["bk"], p["bv"]]),
        "bo": p["bo"], "alg": p["alg"], "alb": p["alb"],
        "cb1": p["cb1"], "clg": p["clg"], "clb": p["clb"], "cb2": p["cb2"],
        "ls": p["ls"],
    }
    b = jnp.zeros((B_ROWS, SLAB_COLS), jnp.float32)
    for name, cols in _B_LAYOUT:
        row = B_OFF[name][0]
        b = b.at[row, 0:cols].set(vecs[name])
    return w, b


# ---------------------------------- wrapper -----------------------------------
def enhanced_crossmodal_clip_forward(image_feats, hateful_feats, benign_feats,
                                     w_slab, b_slab):
    B, d = image_feats.shape
    assert d == FEATURE_DIM
    # Batch tile: 128 rows at real batch sizes, the (8-rounded) batch otherwise.
    if B > 128:
        tile = 128
        bp = ((B + 127) // 128) * 128
    else:
        tile = ((B + 7) // 8) * 8
        bp = tile
    nt = bp // tile

    def padb(x):
        return jnp.pad(x, ((0, bp - B), (0, 0))) if bp != B else x

    # Block-diagonal activation layout for the fused projection heads:
    # group 0 rows carry [img | 0], groups 1,2 carry [0 | txt].  (3, bp, 2D) bf16.
    zpad = jnp.zeros((bp, d), jnp.float32)
    acts = jnp.stack(
        [jnp.concatenate([padb(image_feats), zpad], axis=-1),
         jnp.concatenate([zpad, padb(hateful_feats)], axis=-1),
         jnp.concatenate([zpad, padb(benign_feats)], axis=-1)],
        axis=0).astype(jnp.bfloat16)

    feat, qn, kn = pl.pallas_call(
        _head_kernel,
        grid=(nt,),
        in_specs=[pl.BlockSpec((3, tile, 2 * d), lambda i: (0, i, 0)),
                  pl.BlockSpec(w_slab.shape, lambda i: (0, 0)),    # resident
                  pl.BlockSpec(b_slab.shape, lambda i: (0, 0))],   # resident
        out_specs=[pl.BlockSpec((tile, OUT_W), lambda i: (i, 0)),
                   pl.BlockSpec((tile, d), lambda i: (i, 0)),
                   pl.BlockSpec((2, tile, d), lambda i: (0, i, 0))],
        out_shape=(jax.ShapeDtypeStruct((bp, OUT_W), jnp.float32),
                   jax.ShapeDtypeStruct((bp, d), jnp.float32),
                   jax.ShapeDtypeStruct((2, bp, d), jnp.float32)),
        compiler_params=pltpu.CompilerParams(
            dimension_semantics=("parallel",),
            vmem_limit_bytes=32 * 1024 * 1024),
    )(acts, w_slab, b_slab)

    # O(B^2) cosine-similarity logits as their own 2-D (query-tile x key-tile)
    # kernel so VMEM stays bounded as B grows.
    hs, bs = pl.pallas_call(
        _sims_kernel,
        grid=(nt, nt),
        in_specs=[pl.BlockSpec((tile, d), lambda qi, ki: (qi, 0)),
                  pl.BlockSpec((2, tile, d), lambda qi, ki: (0, ki, 0))],
        out_specs=[pl.BlockSpec((tile, tile), lambda qi, ki: (qi, ki)),
                   pl.BlockSpec((tile, tile), lambda qi, ki: (qi, ki))],
        out_shape=(jax.ShapeDtypeStruct((bp, bp), jnp.float32),
                   jax.ShapeDtypeStruct((bp, bp), jnp.float32)),
        compiler_params=pltpu.CompilerParams(
            dimension_semantics=("parallel", "parallel"),
            vmem_limit_bytes=32 * 1024 * 1024),
    )(qn, kn)

    o = 0
    a_img = feat[:B, o:o + d]; o += d
    a_hate = feat[:B, o:o + d]; o += d
    a_ben = feat[:B, o:o + d]; o += d
    attn = feat[:B, o:o + 9].reshape(B, 3, 3); o += 9
    logits = feat[:B, o:o + C]

    return {
        "logits": logits,
        "hateful_similarity": hs[:B, :B],
        "benign_similarity": bs[:B, :B],
        "attention_probs": attn,
        "image_features": a_img,
        "hateful_features": a_hate,
        "benign_features": a_ben,
    }
    # TODO(synk): optional training-loss branch (CrossEntropy + KLDiv with
    # labels) is host-side glue and omitted from the inference hot path.


if __name__ == "__main__":
    key = jax.random.PRNGKey(0)
    k_img, k_hate, k_ben, k_params = jax.random.split(key, 4)
    B = 4

    # Precomputed (frozen) longclip features standing in for encode_image/text.
    image_feats = jax.random.normal(k_img, (B, FEATURE_DIM), jnp.float32)
    hateful_feats = jax.random.normal(k_hate, (B, FEATURE_DIM), jnp.float32)
    benign_feats = jax.random.normal(k_ben, (B, FEATURE_DIM), jnp.float32)
    w_slab, b_slab = pack_params(init_params(k_params))

    out = jax.jit(enhanced_crossmodal_clip_forward)(
        image_feats, hateful_feats, benign_feats, w_slab, b_slab)
    jax.block_until_ready(out)

    assert out["logits"].shape == (B, NUM_CLASSES)
    assert out["hateful_similarity"].shape == (B, B)
    assert out["benign_similarity"].shape == (B, B)
    assert out["attention_probs"].shape == (B, 3, 3)
    assert out["image_features"].shape == (B, FEATURE_DIM)
    assert all(bool(jnp.all(jnp.isfinite(v))) for v in out.values())
    # each query token's attention probabilities must sum to 1 (exact f32 softmax)
    assert bool(jnp.allclose(out["attention_probs"].sum(-1), 1.0, atol=1e-5))

    print("KERNEL_OK")
</pallas_src>

<mosaic_0001>
module attributes {stable_mosaic.version = 11 : i64} {
  func.func @_sims_kernel(%arg0: i32, %arg1: i32, %arg2: memref<8x64xf32, #tpu.memory_space<vmem>>, %arg3: memref<2x8x64xf32, #tpu.memory_space<vmem>>, %arg4: memref<8x8xf32, #tpu.memory_space<vmem>>, %arg5: memref<8x8xf32, #tpu.memory_space<vmem>>) attributes {dimension_semantics = [#tpu.dimension_semantics<parallel>, #tpu.dimension_semantics<parallel>], iteration_bounds = array<i64: 1, 1>, scalar_prefetch = 0 : i64, scratch_operands = 0 : i64, tpu.core_type = #tpu.core_type<tc>, window_params = [{transform_indices = @transform_0, window_bounds = array<i64: 8, 64>}, {transform_indices = @transform_1, window_bounds = array<i64: 2, 8, 64>}, {transform_indices = @transform_2, window_bounds = array<i64: 8, 8>}, {transform_indices = @transform_3, window_bounds = array<i64: 8, 8>}]} {
    %c0 = arith.constant 0 : index
    %c0_0 = arith.constant 0 : index
    %0 = vector.load %arg2[%c0, %c0_0] : memref<8x64xf32, #tpu.memory_space<vmem>>, vector<8x64xf32>
    %1 = arith.truncf %0 : vector<8x64xf32> to vector<8x64xbf16>
    %c0_1 = arith.constant 0 : index
    %c0_2 = arith.constant 0 : index
    %c0_3 = arith.constant 0 : index
    %2 = vector.load %arg3[%c0_1, %c0_2, %c0_3] : memref<2x8x64xf32, #tpu.memory_space<vmem>>, vector<1x8x64xf32>
    %3 = vector.shape_cast %2 : vector<1x8x64xf32> to vector<8x64xf32>
    %4 = arith.truncf %3 : vector<8x64xf32> to vector<8x64xbf16>
    %c1 = arith.constant 1 : index
    %c0_4 = arith.constant 0 : index
    %c0_5 = arith.constant 0 : index
    %5 = vector.load %arg3[%c1, %c0_4, %c0_5] : memref<2x8x64xf32, #tpu.memory_space<vmem>>, vector<1x8x64xf32>
    %6 = vector.shape_cast %5 : vector<1x8x64xf32> to vector<8x64xf32>
    %7 = arith.truncf %6 : vector<8x64xf32> to vector<8x64xbf16>
    %cst = arith.constant dense<0.000000e+00> : vector<8x8xf32>
    %8 = tpu.matmul %1, %4, %cst {dimension_numbers = #tpu.dot_dimension_numbers<[1], [1], [0], [0], [0, 0, 1, 0], [], []>} : vector<8x64xbf16>, vector<8x64xbf16>, vector<8x8xf32> -> vector<8x8xf32>
    %c0_6 = arith.constant 0 : index
    %c0_7 = arith.constant 0 : index
    %9 = vector.load %arg4[%c0_6, %c0_7] : memref<8x8xf32, #tpu.memory_space<vmem>>, vector<8x8xf32>
    tpu.vector_store %arg4[%c0_6, %c0_7], %8 {strides = array<i32>} : memref<8x8xf32, #tpu.memory_space<vmem>>, vector<8x8xf32>,
    %cst_8 = arith.constant dense<0.000000e+00> : vector<8x8xf32>
    %10 = tpu.matmul %1, %7, %cst_8 {dimension_numbers = #tpu.dot_dimension_numbers<[1], [1], [0], [0], [0, 0, 1, 0], [], []>} : vector<8x64xbf16>, vector<8x64xbf16>, vector<8x8xf32> -> vector<8x8xf32>
    %c0_9 = arith.constant 0 : index
    %c0_10 = arith.constant 0 : index
    %11 = vector.load %arg5[%c0_9, %c0_10] : memref<8x8xf32, #tpu.memory_space<vmem>>, vector<8x8xf32>
    tpu.vector_store %arg5[%c0_9, %c0_10], %10 {strides = array<i32>} : memref<8x8xf32, #tpu.memory_space<vmem>>, vector<8x8xf32>,
    return
  }
  func.func @transform_0(%arg0: i32, %arg1: i32) -> (i32, i32) {
    %c0_i32 = arith.constant 0 : i32
    %c0_i32_0 = arith.constant 0 : i32
    return %arg0, %c0_i32 : i32, i32
  }
  func.func @transform_1(%arg0: i32, %arg1: i32) -> (i32, i32, i32) {
    %c0_i32 = arith.constant 0 : i32
    %c0_i32_0 = arith.constant 0 : i32
    %c0_i32_1 = arith.constant 0 : i32
    return %c0_i32, %arg1, %c0_i32_0 : i32, i32, i32
  }
  func.func @transform_2(%arg0: i32, %arg1: i32) -> (i32, i32) {
    %c0_i32 = arith.constant 0 : i32
    return %arg0, %arg1 : i32, i32
  }
  func.func @transform_3(%arg0: i32, %arg1: i32) -> (i32, i32) {
    %c0_i32 = arith.constant 0 : i32
    return %arg0, %arg1 : i32, i32
  }
}

module attributes {stable_mosaic.version = 11 : i64} {
  func.func @_head_kernel(%arg0: i32, %arg1: memref<3x8x128xbf16, #tpu.memory_space<vmem>>, %arg2: memref<480x192xbf16, #tpu.memory_space<vmem>>, %arg3: memref<15x192xf32, #tpu.memory_space<vmem>>, %arg4: memref<8x256xf32, #tpu.memory_space<vmem>>, %arg5: memref<8x64xf32, #tpu.memory_space<vmem>>, %arg6: memref<2x8x64xf32, #tpu.memory_space<vmem>>) attributes {dimension_semantics = [#tpu.dimension_semantics<parallel>], iteration_bounds = array<i64: 1>, scalar_prefetch = 0 : i64, scratch_operands = 0 : i64, tpu.core_type = #tpu.core_type<tc>, window_params = [{transform_indices = @transform_0, window_bounds = array<i64: 3, 8, 128>}, {pipeline_mode = #tpu.pipeline_mode<synchronous>, transform_indices = @transform_1, window_bounds = array<i64: 480, 192>}, {pipeline_mode = #tpu.pipeline_mode<synchronous>, transform_indices = @transform_2, window_bounds = array<i64: 15, 192>}, {transform_indices = @transform_3, window_bounds = array<i64: 8, 256>}, {transform_indices = @transform_4, window_bounds = array<i64: 8, 64>}, {transform_indices = @transform_5, window_bounds = array<i64: 2, 8, 64>}]} {
    %c0 = arith.constant 0 : index
    %c0_0 = arith.constant 0 : index
    %c0_1 = arith.constant 0 : index
    %0 = vector.load %arg1[%c0, %c0_0, %c0_1] : memref<3x8x128xbf16, #tpu.memory_space<vmem>>, vector<1x8x128xbf16>
    %1 = vector.shape_cast %0 : vector<1x8x128xbf16> to vector<8x128xbf16>
    %c1 = arith.constant 1 : index
    %c0_2 = arith.constant 0 : index
    %c0_3 = arith.constant 0 : index
    %2 = vector.load %arg1[%c1, %c0_2, %c0_3] : memref<3x8x128xbf16, #tpu.memory_space<vmem>>, vector<1x8x128xbf16>
    %3 = vector.shape_cast %2 : vector<1x8x128xbf16> to vector<8x128xbf16>
    %c2 = arith.constant 2 : index
    %c0_4 = arith.constant 0 : index
    %c0_5 = arith.constant 0 : index
    %4 = vector.load %arg1[%c2, %c0_4, %c0_5] : memref<3x8x128xbf16, #tpu.memory_space<vmem>>, vector<1x8x128xbf16>
    %5 = vector.shape_cast %4 : vector<1x8x128xbf16> to vector<8x128xbf16>
    %6 = tpu.concatenate %1, %3, %5 in 0 : vector<8x128xbf16>, vector<8x128xbf16>, vector<8x128xbf16> -> vector<24x128xbf16>
    %c0_6 = arith.constant 0 : index
    %c0_7 = arith.constant 0 : index
    %7 = vector.load %arg2[%c0_6, %c0_7] : memref<480x192xbf16, #tpu.memory_space<vmem>>, vector<128x64xbf16>
    %cst = arith.constant dense<0.000000e+00> : vector<24x64xf32>
    %8 = tpu.matmul %6, %7, %cst {dimension_numbers = #tpu.dot_dimension_numbers<[1], [0], [0], [1], [0, 0, 1, 1], [], []>} : vector<24x128xbf16>, vector<128x64xbf16>, vector<24x64xf32> -> vector<24x64xf32>
    %c0_8 = arith.constant 0 : index
    %c0_9 = arith.constant 0 : index
    %9 = vector.load %arg3[%c0_8, %c0_9] : memref<15x192xf32, #tpu.memory_space<vmem>>, vector<1x64xf32>
    %10 = vector.broadcast %9 : vector<1x64xf32> to vector<24x64xf32>
    %11 = arith.addf %8, %10 : vector<24x64xf32>
    %cst_10 = arith.constant 5.000000e-01 : f32
    %12 = vector.broadcast %cst_10 : f32 to vector<24x64xf32>
    %13 = arith.mulf %12, %11 : vector<24x64xf32>
    %cst_11 = arith.constant 4.471500e-02 : f32
    %14 = vector.broadcast %cst_11 : f32 to vector<24x64xf32>
    %15 = arith.mulf %14, %11 : vector<24x64xf32>
    %16 = arith.mulf %15, %11 : vector<24x64xf32>
    %17 = arith.mulf %16, %11 : vector<24x64xf32>
    %18 = arith.addf %11, %17 : vector<24x64xf32>
    %cst_12 = arith.constant 0.797884583 : f32
    %19 = vector.broadcast %cst_12 : f32 to vector<24x64xf32>
    %20 = arith.mulf %19, %18 : vector<24x64xf32>
    %21 = math.tanh %20 : vector<24x64xf32>
    %cst_13 = arith.constant 1.000000e+00 : f32
    %22 = vector.broadcast %cst_13 : f32 to vector<24x64xf32>
    %23 = arith.addf %22, %21 : vector<24x64xf32>
    %24 = arith.mulf %13, %23 : vector<24x64xf32>
    %25 = arith.truncf %24 : vector<24x64xf32> to vector<24x64xbf16>
    %c128 = arith.constant 128 : index
    %c0_14 = arith.constant 0 : index
    %26 = vector.load %arg2[%c128, %c0_14] : memref<480x192xbf16, #tpu.memory_space<vmem>>, vector<64x128xbf16>
    %cst_15 = arith.constant dense<0.000000e+00> : vector<24x128xf32>
    %27 = tpu.matmul %25, %26, %cst_15 {dimension_numbers = #tpu.dot_dimension_numbers<[1], [0], [0], [1], [0, 0, 1, 1], [], []>} : vector<24x64xbf16>, vector<64x128xbf16>, vector<24x128xf32> -> vector<24x128xf32>
    %c1_16 = arith.constant 1 : index
    %c0_17 = arith.constant 0 : index
    %28 = vector.load %arg3[%c1_16, %c0_17] : memref<15x192xf32, #tpu.memory_space<vmem>>, vector<1x128xf32>
    %29 = vector.broadcast %28 : vector<1x128xf32> to vector<24x128xf32>
    %30 = arith.addf %27, %29 : vector<24x128xf32>
    %31 = vector.extract_strided_slice %30 {offsets = [0, 0], sizes = [8, 64], strides = [1, 1]} : vector<24x128xf32> to vector<8x64xf32>
    %c2_18 = arith.constant 2 : index
    %c0_19 = arith.constant 0 : index
    %32 = vector.load %arg3[%c2_18, %c0_19] : memref<15x192xf32, #tpu.memory_space<vmem>>, vector<1x64xf32>
    %c3 = arith.constant 3 : index
    %c0_20 = arith.constant 0 : index
    %33 = vector.load %arg3[%c3, %c0_20] : memref<15x192xf32, #tpu.memory_space<vmem>>, vector<1x64xf32>
    %cst_21 = arith.constant dense<0.000000e+00> : vector<8xf32>
    %34 = vector.multi_reduction <add>, %31, %cst_21 [1] : vector<8x64xf32> to vector<8xf32>
    %35 = vector.shape_cast %34 : vector<8xf32> to vector<8x1xf32>
    %cst_22 = arith.constant 6.400000e+01 : f32
    %36 = vector.broadcast %cst_22 : f32 to vector<8x1xf32>
    %37 = arith.divf %35, %36 : vector<8x1xf32>
    %38 = arith.mulf %31, %31 : vector<8x64xf32>
    %cst_23 = arith.constant dense<0.000000e+00> : vector<8xf32>
    %39 = vector.multi_reduction <add>, %38, %cst_23 [1] : vector<8x64xf32> to vector<8xf32>
    %40 = vector.shape_cast %39 : vector<8xf32> to vector<8x1xf32>
    %cst_24 = arith.constant 6.400000e+01 : f32
    %41 = vector.broadcast %cst_24 : f32 to vector<8x1xf32>
    %42 = arith.divf %40, %41 : vector<8x1xf32>
    %43 = arith.mulf %37, %37 : vector<8x1xf32>
    %44 = arith.subf %42, %43 : vector<8x1xf32>
    %cst_25 = arith.constant 0.000000e+00 : f32
    %45 = vector.broadcast %cst_25 : f32 to vector<8x1xf32>
    %46 = arith.maximumf %44, %45 : vector<8x1xf32>
    %47 = vector.broadcast %37 : vector<8x1xf32> to vector<8x64xf32>
    %48 = arith.subf %31, %47 : vector<8x64xf32>
    %cst_26 = arith.constant 9.99999974E-6 : f32
    %49 = vector.broadcast %cst_26 : f32 to vector<8x1xf32>
    %50 = arith.addf %46, %49 : vector<8x1xf32>
    %51 = math.rsqrt %50 : vector<8x1xf32>
    %52 = vector.broadcast %51 : vector<8x1xf32> to vector<8x64xf32>
    %53 = arith.mulf %48, %52 : vector<8x64xf32>
    %54 = vector.broadcast %32 : vector<1x64xf32> to vector<8x64xf32>
    %55 = arith.mulf %53, %54 : vector<8x64xf32>
    %56 = vector.broadcast %33 : vector<1x64xf32> to vector<8x64xf32>
    %57 = arith.addf %55, %56 : vector<8x64xf32>
    %58 = vector.extract_strided_slice %30 {offsets = [8, 64], sizes = [16, 64], strides = [1, 1]} : vector<24x128xf32> to vector<16x64xf32>
    %c4 = arith.constant 4 : index
    %c0_27 = arith.constant 0 : index
    %59 = vector.load %arg3[%c4, %c0_27] : memref<15x192xf32, #tpu.memory_space<vmem>>, vector<1x64xf32>
    %c5 = arith.constant 5 : index
    %c0_28 = arith.constant 0 : index
    %60 = vector.load %arg3[%c5, %c0_28] : memref<15x192xf32, #tpu.memory_space<vmem>>, vector<1x64xf32>
    %cst_29 = arith.constant dense<0.000000e+00> : vector<16xf32>
    %61 = vector.multi_reduction <add>, %58, %cst_29 [1] : vector<16x64xf32> to vector<16xf32>
    %62 = vector.shape_cast %61 : vector<16xf32> to vector<16x1xf32>
    %cst_30 = arith.constant 6.400000e+01 : f32
    %63 = vector.broadcast %cst_30 : f32 to vector<16x1xf32>
    %64 = arith.divf %62, %63 : vector<16x1xf32>
    %65 = arith.mulf %58, %58 : vector<16x64xf32>
    %cst_31 = arith.constant dense<0.000000e+00> : vector<16xf32>
    %66 = vector.multi_reduction <add>, %65, %cst_31 [1] : vector<16x64xf32> to vector<16xf32>
    %67 = vector.shape_cast %66 : vector<16xf32> to vector<16x1xf32>
    %cst_32 = arith.constant 6.400000e+01 : f32
    %68 = vector.broadcast %cst_32 : f32 to vector<16x1xf32>
    %69 = arith.divf %67, %68 : vector<16x1xf32>
    %70 = arith.mulf %64, %64 : vector<16x1xf32>
    %71 = arith.subf %69, %70 : vector<16x1xf32>
    %cst_33 = arith.constant 0.000000e+00 : f32
    %72 = vector.broadcast %cst_33 : f32 to vector<16x1xf32>
    %73 = arith.maximumf %71, %72 : vector<16x1xf32>
    %74 = vector.broadcast %64 : vector<16x1xf32> to vector<16x64xf32>
    %75 = arith.subf %58, %74 : vector<16x64xf32>
    %cst_34 = arith.constant 9.99999974E-6 : f32
    %76 = vector.broadcast %cst_34 : f32 to vector<16x1xf32>
    %77 = arith.addf %73, %76 : vector<16x1xf32>
    %78 = math.rsqrt %77 : vector<16x1xf32>
    %79 = vector.broadcast %78 : vector<16x1xf32> to vector<16x64xf32>
    %80 = arith.mulf %75, %79 : vector<16x64xf32>
    %81 = vector.broadcast %59 : vector<1x64xf32> to vector<16x64xf32>
    %82 = arith.mulf %80, %81 : vector<16x64xf32>
    %83 = vector.broadcast %60 : vector<1x64xf32> to vector<16x64xf32>
    %84 = arith.addf %82, %83 : vector<16x64xf32>
    %85 = tpu.concatenate %57, %84 in 0 : vector<8x64xf32>, vector<16x64xf32> -> vector<24x64xf32>
    %86 = arith.truncf %85 : vector<24x64xf32> to vector<24x64xbf16>
    %c192 = arith.constant 192 : index
    %c0_35 = arith.constant 0 : index
    %87 = vector.load %arg2[%c192, %c0_35] : memref<480x192xbf16, #tpu.memory_space<vmem>>, vector<64x192xbf16>
    %cst_36 = arith.constant dense<0.000000e+00> : vector<24x192xf32>
    %88 = tpu.matmul %86, %87, %cst_36 {dimension_numbers = #tpu.dot_dimension_numbers<[1], [0], [0], [1], [0, 0, 1, 1], [], []>} : vector<24x64xbf16>, vector<64x192xbf16>, vector<24x192xf32> -> vector<24x192xf32>
    %c6 = arith.constant 6 : index
    %c0_37 = arith.constant 0 : index
    %89 = vector.load %arg3[%c6, %c0_37] : memref<15x192xf32, #tpu.memory_space<vmem>>, vector<1x192xf32>
    %90 = vector.broadcast %89 : vector<1x192xf32> to vector<24x192xf32>
    %91 = arith.addf %88, %90 : vector<24x192xf32>
    %92 = vector.extract_strided_slice %91 {offsets = [0, 0], sizes = [24, 64], strides = [1, 1]} : vector<24x192xf32> to vector<24x64xf32>
    %93 = vector.extract_strided_slice %91 {offsets = [0, 64], sizes = [24, 64], strides = [1, 1]} : vector<24x192xf32> to vector<24x64xf32>
    %94 = vector.extract_strided_slice %91 {offsets = [0, 128], sizes = [24, 64], strides = [1, 1]} : vector<24x192xf32> to vector<24x64xf32>
    %c16_i32 = arith.constant 16 : i32
    %95 = tpu.dynamic_rotate %93 by %c16_i32 dim 0 : vector<24x64xf32>, i32 -> vector<24x64xf32>
    %c8_i32 = arith.constant 8 : i32
    %96 = tpu.dynamic_rotate %93 by %c8_i32 dim 0 : vector<24x64xf32>, i32 -> vector<24x64xf32>
    %c16_i32_38 = arith.constant 16 : i32
    %97 = tpu.dynamic_rotate %94 by %c16_i32_38 dim 0 : vector<24x64xf32>, i32 -> vector<24x64xf32>
    %c8_i32_39 = arith.constant 8 : i32
    %98 = tpu.dynamic_rotate %94 by %c8_i32_39 dim 0 : vector<24x64xf32>, i32 -> vector<24x64xf32>
    %99 = arith.mulf %92, %93 : vector<24x64xf32>
    %cst_40 = arith.constant dense<0.000000e+00> : vector<24xf32>
    %100 = vector.multi_reduction <add>, %99, %cst_40 [1] : vector<24x64xf32> to vector<24xf32>
    %101 = vector.shape_cast %100 : vector<24xf32> to vector<24x1xf32>
    %102 = arith.mulf %92, %95 : vector<24x64xf32>
    %cst_41 = arith.constant dense<0.000000e+00> : vector<24xf32>
    %103 = vector.multi_reduction <add>, %102, %cst_41 [1] : vector<24x64xf32> to vector<24xf32>
    %104 = vector.shape_cast %103 : vector<24xf32> to vector<24x1xf32>
    %105 = arith.mulf %92, %96 : vector<24x64xf32>
    %cst_42 = arith.constant dense<0.000000e+00> : vector<24xf32>
    %106 = vector.multi_reduction <add>, %105, %cst_42 [1] : vector<24x64xf32> to vector<24xf32>
    %107 = vector.shape_cast %106 : vector<24xf32> to vector<24x1xf32>
    %108 = arith.maximumf %101, %104 : vector<24x1xf32>
    %109 = arith.maximumf %108, %107 : vector<24x1xf32>
    %110 = arith.subf %101, %109 : vector<24x1xf32>
    %111 = math.exp %110 : vector<24x1xf32>
    %112 = arith.subf %104, %109 : vector<24x1xf32>
    %113 = math.exp %112 : vector<24x1xf32>
    %114 = arith.subf %107, %109 : vector<24x1xf32>
    %115 = math.exp %114 : vector<24x1xf32>
    %116 = arith.addf %111, %113 : vector<24x1xf32>
    %117 = arith.addf %116, %115 : vector<24x1xf32>
    %cst_43 = arith.constant 1.000000e+00 : f32
    %118 = vector.broadcast %cst_43 : f32 to vector<24x1xf32>
    %119 = arith.divf %118, %117 : vector<24x1xf32>
    %120 = arith.mulf %111, %119 : vector<24x1xf32>
    %121 = arith.mulf %113, %119 : vector<24x1xf32>
    %122 = arith.mulf %115, %119 : vector<24x1xf32>
    %123 = vector.broadcast %120 : vector<24x1xf32> to vector<24x64xf32>
    %124 = arith.mulf %123, %94 : vector<24x64xf32>
    %125 = vector.broadcast %121 : vector<24x1xf32> to vector<24x64xf32>
    %126 = arith.mulf %125, %97 : vector<24x64xf32>
    %127 = arith.addf %124, %126 : vector<24x64xf32>
    %128 = vector.broadcast %122 : vector<24x1xf32> to vector<24x64xf32>
    %129 = arith.mulf %128, %98 : vector<24x64xf32>
    %130 = arith.addf %127, %129 : vector<24x64xf32>
    %131 = arith.truncf %130 : vector<24x64xf32> to vector<24x64xbf16>
    %c256 = arith.constant 256 : index
    %c0_44 = arith.constant 0 : index
    %132 = vector.load %arg2[%c256, %c0_44] : memref<480x192xbf16, #tpu.memory_space<vmem>>, vector<64x64xbf16>
    %cst_45 = arith.constant dense<0.000000e+00> : vector<24x64xf32>
    %133 = tpu.matmul %131, %132, %cst_45 {dimension_numbers = #tpu.dot_dimension_numbers<[1], [0], [0], [1], [0, 0, 1, 1], [], []>} : vector<24x64xbf16>, vector<64x64xbf16>, vector<24x64xf32> -> vector<24x64xf32>
    %134 = arith.addf %85, %133 : vector<24x64xf32>
    %c7 = arith.constant 7 : index
    %c0_46 = arith.constant 0 : index
    %135 = vector.load %arg3[%c7, %c0_46] : memref<15x192xf32, #tpu.memory_space<vmem>>, vector<1x64xf32>
    %136 = vector.broadcast %135 : vector<1x64xf32> to vector<24x64xf32>
    %137 = arith.addf %134, %136 : vector<24x64xf32>
    %c8 = arith.constant 8 : index
    %c0_47 = arith.constant 0 : index
    %138 = vector.load %arg3[%c8, %c0_47] : memref<15x192xf32, #tpu.memory_space<vmem>>, vector<1x64xf32>
    %c9 = arith.constant 9 : index
    %c0_48 = arith.constant 0 : index
    %139 = vector.load %arg3[%c9, %c0_48] : memref<15x192xf32, #tpu.memory_space<vmem>>, vector<1x64xf32>
    %cst_49 = arith.constant dense<0.000000e+00> : vector<24xf32>
    %140 = vector.multi_reduction <add>, %137, %cst_49 [1] : vector<24x64xf32> to vector<24xf32>
    %141 = vector.shape_cast %140 : vector<24xf32> to vector<24x1xf32>
    %cst_50 = arith.constant 6.400000e+01 : f32
    %142 = vector.broadcast %cst_50 : f32 to vector<24x1xf32>
    %143 = arith.divf %141, %142 : vector<24x1xf32>
    %144 = arith.mulf %137, %137 : vector<24x64xf32>
    %cst_51 = arith.constant dense<0.000000e+00> : vector<24xf32>
    %145 = vector.multi_reduction <add>, %144, %cst_51 [1] : vector<24x64xf32> to vector<24xf32>
    %146 = vector.shape_cast %145 : vector<24xf32> to vector<24x1xf32>
    %cst_52 = arith.constant 6.400000e+01 : f32
    %147 = vector.broadcast %cst_52 : f32 to vector<24x1xf32>
    %148 = arith.divf %146, %147 : vector<24x1xf32>
    %149 = arith.mulf %143, %143 : vector<24x1xf32>
    %150 = arith.subf %148, %149 : vector<24x1xf32>
    %cst_53 = arith.constant 0.000000e+00 : f32
    %151 = vector.broadcast %cst_53 : f32 to vector<24x1xf32>
    %152 = arith.maximumf %150, %151 : vector<24x1xf32>
    %153 = vector.broadcast %143 : vector<24x1xf32> to vector<24x64xf32>
    %154 = arith.subf %137, %153 : vector<24x64xf32>
    %cst_54 = arith.constant 9.99999974E-6 : f32
    %155 = vector.broadcast %cst_54 : f32 to vector<24x1xf32>
    %156 = arith.addf %152, %155 : vector<24x1xf32>
    %157 = math.rsqrt %156 : vector<24x1xf32>
    %158 = vector.broadcast %157 : vector<24x1xf32> to vector<24x64xf32>
    %159 = arith.mulf %154, %158 : vector<24x64xf32>
    %160 = vector.broadcast %138 : vector<1x64xf32> to vector<24x64xf32>
    %161 = arith.mulf %159, %160 : vector<24x64xf32>
    %162 = vector.broadcast %139 : vector<1x64xf32> to vector<24x64xf32>
    %163 = arith.addf %161, %162 : vector<24x64xf32>
    %164 = vector.extract_strided_slice %163 {offsets = [0, 0], sizes = [8, 64], strides = [1, 1]} : vector<24x64xf32> to vector<8x64xf32>
    %165 = vector.extract_strided_slice %163 {offsets = [8, 0], sizes = [8, 64], strides = [1, 1]} : vector<24x64xf32> to vector<8x64xf32>
    %166 = vector.extract_strided_slice %163 {offsets = [16, 0], sizes = [8, 64], strides = [1, 1]} : vector<24x64xf32> to vector<8x64xf32>
    %167 = vector.extract_strided_slice %120 {offsets = [0, 0], sizes = [8, 1], strides = [1, 1]} : vector<24x1xf32> to vector<8x1xf32>
    %168 = vector.extract_strided_slice %121 {offsets = [0, 0], sizes = [8, 1], strides = [1, 1]} : vector<24x1xf32> to vector<8x1xf32>
    %169 = vector.extract_strided_slice %122 {offsets = [0, 0], sizes = [8, 1], strides = [1, 1]} : vector<24x1xf32> to vector<8x1xf32>
    %170 = vector.extract_strided_slice %122 {offsets = [8, 0], sizes = [8, 1], strides = [1, 1]} : vector<24x1xf32> to vector<8x1xf32>
    %171 = vector.extract_strided_slice %120 {offsets = [8, 0], sizes = [8, 1], strides = [1, 1]} : vector<24x1xf32> to vector<8x1xf32>
    %172 = vector.extract_strided_slice %121 {offsets = [8, 0], sizes = [8, 1], strides = [1, 1]} : vector<24x1xf32> to vector<8x1xf32>
    %173 = vector.extract_strided_slice %121 {offsets = [16, 0], sizes = [8, 1], strides = [1, 1]} : vector<24x1xf32> to vector<8x1xf32>
    %174 = vector.extract_strided_slice %122 {offsets = [16, 0], sizes = [8, 1], strides = [1, 1]} : vector<24x1xf32> to vector<8x1xf32>
    %175 = vector.extract_strided_slice %120 {offsets = [16, 0], sizes = [8, 1], strides = [1, 1]} : vector<24x1xf32> to vector<8x1xf32>
    %176 = tpu.concatenate %167, %168, %169, %170, %171, %172, %173, %174, %175 in 1 : vector<8x1xf32>, vector<8x1xf32>, vector<8x1xf32>, vector<8x1xf32>, vector<8x1xf32>, vector<8x1xf32>, vector<8x1xf32>, vector<8x1xf32>, vector<8x1xf32> -> vector<8x9xf32>
    %177 = tpu.concatenate %165, %166 in 1 : vector<8x64xf32>, vector<8x64xf32> -> vector<8x128xf32>
    %178 = arith.truncf %177 : vector<8x128xf32> to vector<8x128xbf16>
    %c320 = arith.constant 320 : index
    %c0_55 = arith.constant 0 : index
    %179 = vector.load %arg2[%c320, %c0_55] : memref<480x192xbf16, #tpu.memory_space<vmem>>, vector<128x32xbf16>
    %cst_56 = arith.constant dense<0.000000e+00> : vector<8x32xf32>
    %180 = tpu.matmul %178, %179, %cst_56 {dimension_numbers = #tpu.dot_dimension_numbers<[1], [0], [0], [1], [0, 0, 1, 1], [], []>} : vector<8x128xbf16>, vector<128x32xbf16>, vector<8x32xf32> -> vector<8x32xf32>
    %c10 = arith.constant 10 : index
    %c0_57 = arith.constant 0 : index
    %181 = vector.load %arg3[%c10, %c0_57] : memref<15x192xf32, #tpu.memory_space<vmem>>, vector<1x32xf32>
    %182 = vector.broadcast %181 : vector<1x32xf32> to vector<8x32xf32>
    %183 = arith.addf %180, %182 : vector<8x32xf32>
    %c11 = arith.constant 11 : index
    %c0_58 = arith.constant 0 : index
    %184 = vector.load %arg3[%c11, %c0_58] : memref<15x192xf32, #tpu.memory_space<vmem>>, vector<1x32xf32>
    %c12 = arith.constant 12 : index
    %c0_59 = arith.constant 0 : index
    %185 = vector.load %arg3[%c12, %c0_59] : memref<15x192xf32, #tpu.memory_space<vmem>>, vector<1x32xf32>
    %cst_60 = arith.constant dense<0.000000e+00> : vector<8xf32>
    %186 = vector.multi_reduction <add>, %183, %cst_60 [1] : vector<8x32xf32> to vector<8xf32>
    %187 = vector.shape_cast %186 : vector<8xf32> to vector<8x1xf32>
    %cst_61 = arith.constant 3.200000e+01 : f32
    %188 = vector.broadcast %cst_61 : f32 to vector<8x1xf32>
    %189 = arith.divf %187, %188 : vector<8x1xf32>
    %190 = arith.mulf %183, %183 : vector<8x32xf32>
    %cst_62 = arith.constant dense<0.000000e+00> : vector<8xf32>
    %191 = vector.multi_reduction <add>, %190, %cst_62 [1] : vector<8x32xf32> to vector<8xf32>
    %192 = vector.shape_cast %191 : vector<8xf32> to vector<8x1xf32>
    %cst_63 = arith.constant 3.200000e+01 : f32
    %193 = vector.broadcast %cst_63 : f32 to vector<8x1xf32>
    %194 = arith.divf %192, %193 : vector<8x1xf32>
    %195 = arith.mulf %189, %189 : vector<8x1xf32>
    %196 = arith.subf %194, %195 : vector<8x1xf32>
    %cst_64 = arith.constant 0.000000e+00 : f32
    %197 = vector.broadcast %cst_64 : f32 to vector<8x1xf32>
    %198 = arith.maximumf %196, %197 : vector<8x1xf32>
    %199 = vector.broadcast %189 : vector<8x1xf32> to vector<8x32xf32>
    %200 = arith.subf %183, %199 : vector<8x32xf32>
    %cst_65 = arith.constant 9.99999974E-6 : f32
    %201 = vector.broadcast %cst_65 : f32 to vector<8x1xf32>
    %202 = arith.addf %198, %201 : vector<8x1xf32>
    %203 = math.rsqrt %202 : vector<8x1xf32>
    %204 = vector.broadcast %203 : vector<8x1xf32> to vector<8x32xf32>
    %205 = arith.mulf %200, %204 : vector<8x32xf32>
    %206 = vector.broadcast %184 : vector<1x32xf32> to vector<8x32xf32>
    %207 = arith.mulf %205, %206 : vector<8x32xf32>
    %208 = vector.broadcast %185 : vector<1x32xf32> to vector<8x32xf32>
    %209 = arith.addf %207, %208 : vector<8x32xf32>
    %cst_66 = arith.constant 5.000000e-01 : f32
    %210 = vector.broadcast %cst_66 : f32 to vector<8x32xf32>
    %211 = arith.mulf %210, %209 : vector<8x32xf32>
    %cst_67 = arith.constant 4.471500e-02 : f32
    %212 = vector.broadcast %cst_67 : f32 to vector<8x32xf32>
    %213 = arith.mulf %212, %209 : vector<8x32xf32>
    %214 = arith.mulf %213, %209 : vector<8x32xf32>
    %215 = arith.mulf %214, %209 : vector<8x32xf32>
    %216 = arith.addf %209, %215 : vector<8x32xf32>
    %cst_68 = arith.constant 0.797884583 : f32
    %217 = vector.broadcast %cst_68 : f32 to vector<8x32xf32>
    %218 = arith.mulf %217, %216 : vector<8x32xf32>
    %219 = math.tanh %218 : vector<8x32xf32>
    %cst_69 = arith.constant 1.000000e+00 : f32
    %220 = vector.broadcast %cst_69 : f32 to vector<8x32xf32>
    %221 = arith.addf %220, %219 : vector<8x32xf32>
    %222 = arith.mulf %211, %221 : vector<8x32xf32>
    %223 = arith.truncf %222 : vector<8x32xf32> to vector<8x32xbf16>
    %c448 = arith.constant 448 : index
    %c0_70 = arith.constant 0 : index
    %224 = vector.load %arg2[%c448, %c0_70] : memref<480x192xbf16, #tpu.memory_space<vmem>>, vector<32x2xbf16>
    %cst_71 = arith.constant dense<0.000000e+00> : vector<8x2xf32>
    %225 = tpu.matmul %223, %224, %cst_71 {dimension_numbers = #tpu.dot_dimension_numbers<[1], [0], [0], [1], [0, 0, 1, 1], [], []>} : vector<8x32xbf16>, vector<32x2xbf16>, vector<8x2xf32> -> vector<8x2xf32>
    %c13 = arith.constant 13 : index
    %c0_72 = arith.constant 0 : index
    %226 = vector.load %arg3[%c13, %c0_72] : memref<15x192xf32, #tpu.memory_space<vmem>>, vector<1x2xf32>
    %227 = vector.broadcast %226 : vector<1x2xf32> to vector<8x2xf32>
    %228 = arith.addf %225, %227 : vector<8x2xf32>
    %229 = arith.mulf %163, %163 : vector<24x64xf32>
    %cst_73 = arith.constant dense<0.000000e+00> : vector<24xf32>
    %230 = vector.multi_reduction <add>, %229, %cst_73 [1] : vector<24x64xf32> to vector<24xf32>
    %231 = vector.shape_cast %230 : vector<24xf32> to vector<24x1xf32>
    %cst_74 = arith.constant 1.000000e-24 : f32
    %232 = vector.broadcast %cst_74 : f32 to vector<24x1xf32>
    %233 = arith.maximumf %231, %232 : vector<24x1xf32>
    %234 = math.rsqrt %233 : vector<24x1xf32>
    %235 = vector.broadcast %234 : vector<24x1xf32> to vector<24x64xf32>
    %236 = arith.mulf %163, %235 : vector<24x64xf32>
    %c14 = arith.constant 14 : index
    %c0_75 = arith.constant 0 : index
    %237 = vector.load %arg3[%c14, %c0_75] : memref<15x192xf32, #tpu.memory_space<vmem>>, vector<1x1xf32>
    %238 = math.exp %237 : vector<1x1xf32>
    %239 = vector.extract_strided_slice %236 {offsets = [0, 0], sizes = [8, 64], strides = [1, 1]} : vector<24x64xf32> to vector<8x64xf32>
    %240 = vector.broadcast %238 : vector<1x1xf32> to vector<8x64xf32>
    %241 = arith.mulf %239, %240 : vector<8x64xf32>
    %c0_76 = arith.constant 0 : index
    %c0_77 = arith.constant 0 : index
    %242 = vector.load %arg5[%c0_76, %c0_77] : memref<8x64xf32, #tpu.memory_space<vmem>>, vector<8x64xf32>
    tpu.vector_store %arg5[%c0_76, %c0_77], %241 {strides = array<i32>} : memref<8x64xf32, #tpu.memory_space<vmem>>, vector<8x64xf32>,
    %243 = vector.extract_strided_slice %236 {offsets = [8, 0], sizes = [8, 64], strides = [1, 1]} : vector<24x64xf32> to vector<8x64xf32>
    %c0_78 = arith.constant 0 : index
    %c0_79 = arith.constant 0 : index
    %c0_80 = arith.constant 0 : index
    %244 = vector.load %arg6[%c0_78, %c0_79, %c0_80] : memref<2x8x64xf32, #tpu.memory_space<vmem>>, vector<1x8x64xf32>
    %245 = vector.shape_cast %244 : vector<1x8x64xf32> to vector<8x64xf32>
    %246 = vector.shape_cast %243 : vector<8x64xf32> to vector<1x8x64xf32>
    tpu.vector_store %arg6[%c0_78, %c0_79, %c0_80], %246 {strides = array<i32>} : memref<2x8x64xf32, #tpu.memory_space<vmem>>, vector<1x8x64xf32>,
    %247 = vector.extract_strided_slice %236 {offsets = [16, 0], sizes = [8, 64], strides = [1, 1]} : vector<24x64xf32> to vector<8x64xf32>
    %c1_81 = arith.constant 1 : index
    %c0_82 = arith.constant 0 : index
    %c0_83 = arith.constant 0 : index
    %248 = vector.load %arg6[%c1_81, %c0_82, %c0_83] : memref<2x8x64xf32, #tpu.memory_space<vmem>>, vector<1x8x64xf32>
    %249 = vector.shape_cast %248 : vector<1x8x64xf32> to vector<8x64xf32>
    %250 = vector.shape_cast %247 : vector<8x64xf32> to vector<1x8x64xf32>
    tpu.vector_store %arg6[%c1_81, %c0_82, %c0_83], %250 {strides = array<i32>} : memref<2x8x64xf32, #tpu.memory_space<vmem>>, vector<1x8x64xf32>,
    %251 = tpu.concatenate %164, %165, %166, %176, %228 in 1 : vector<8x64xf32>, vector<8x64xf32>, vector<8x64xf32>, vector<8x9xf32>, vector<8x2xf32> -> vector<8x203xf32>
    %cst_84 = arith.constant 0.000000e+00 : f32
    %252 = vector.broadcast %cst_84 : f32 to vector<8x53xf32>
    %253 = tpu.concatenate %251, %252 in 1 : vector<8x203xf32>, vector<8x53xf32> -> vector<8x256xf32>
    %c0_85 = arith.constant 0 : index
    %c0_86 = arith.constant 0 : index
    %254 = vector.load %arg4[%c0_85, %c0_86] : memref<8x256xf32, #tpu.memory_space<vmem>>, vector<8x256xf32>
    tpu.vector_store %arg4[%c0_85, %c0_86], %253 {strides = array<i32>} : memref<8x256xf32, #tpu.memory_space<vmem>>, vector<8x256xf32>,
    return
  }
  func.func @transform_0(%arg0: i32) -> (i32, i32, i32) {
    %c0_i32 = arith.constant 0 : i32
    %c0_i32_0 = arith.constant 0 : i32
    %c0_i32_1 = arith.constant 0 : i32
    return %c0_i32, %arg0, %c0_i32_0 : i32, i32, i32
  }
  func.func @transform_1(%arg0: i32) -> (i32, i32) {
    %c0_i32 = arith.constant 0 : i32
    %c0_i32_0 = arith.constant 0 : i32
    %c0_i32_1 = arith.constant 0 : i32
    return %c0_i32, %c0_i32_0 : i32, i32
  }
  func.func @transform_2(%arg0: i32) -> (i32, i32) {
    %c0_i32 = arith.constant 0 : i32
    %c0_i32_0 = arith.constant 0 : i32
    %c0_i32_1 = arith.constant 0 : i32
    return %c0_i32, %c0_i32_0 : i32, i32
  }
  func.func @transform_3(%arg0: i32) -> (i32, i32) {
    %c0_i32 = arith.constant 0 : i32
    %c0_i32_0 = arith.constant 0 : i32
    return %arg0, %c0_i32 : i32, i32
  }
  func.func @transform_4(%arg0: i32) -> (i32, i32) {
    %c0_i32 = arith.constant 0 : i32
    %c0_i32_0 = arith.constant 0 : i32
    return %arg0, %c0_i32 : i32, i32
  }
  func.func @transform_5(%arg0: i32) -> (i32, i32, i32) {
    %c0_i32 = arith.constant 0 : i32
    %c0_i32_0 = arith.constant 0 : i32
    %c0_i32_1 = arith.constant 0 : i32
    return %c0_i32, %arg0, %c0_i32_0 : i32, i32, i32
  }
}

</mosaic_0001>

<llo_original>
// kernel: enhanced_crossmodal_clip_forward.3
$region0: #{enhanced_crossmodal_clip_forward.3}
  #allocation0 [shape = 'u32[]', space=smem, size = 0x4, offset = 0x4, fixed_abs, tag = 'smem constant byte address 0x4 - core index']
  #allocation1 [shape = 'u32[144,128]{1,0:T(1,128)}', space=vmem, size = 0x12000, scoped, tag = 'internal scratch']
  %s0 = inlined_call_operand.vmem [shape: f32[8,64], index: 0, kind: input, shape index: {}]
  %s1 = inlined_call_operand.vmem [shape: f32[2,8,64], index: 1, kind: input, shape index: {}]
  %s2 = inlined_call_operand.vmem [shape: f32[8,8], index: 2, kind: output, shape index: {0}]
  %s3 = inlined_call_operand.vmem [shape: f32[8,8], index: 3, kind: output, shape index: {1}]
  %4 = xla_tuple %s2, %s3
  %s5 = sld [smem:[#allocation0]]
  $region26: #{enhanced_crossmodal_clip_forward.3} parent=0
    _
  %s7 = ssub.s32 1, %s5
  %s8 = scalar_select 0, %s7, %s5
  // Predicated region
  $region2: #{enhanced_crossmodal_clip_forward.3} parent=0 // pred_check
    _
  $region3: #{enhanced_crossmodal_clip_forward.3} parent=0 // pred_check_branch
    %10 = sbr.rel (0) target = $region5
  $region4: #{enhanced_crossmodal_clip_forward.3} parent=0 // pred_region
    _
  $region5: #{enhanced_crossmodal_clip_forward.3} parent=0 // pred_fallthru
    _
  // Predicated region
  $region6: #{enhanced_crossmodal_clip_forward.3} parent=0 // pred_check
    _
  $region7: #{enhanced_crossmodal_clip_forward.3} parent=0 // pred_check_branch
    %12 = sbr.rel (0) target = $region9
  $region8: #{enhanced_crossmodal_clip_forward.3} parent=0 // pred_region
    _
  $region9: #{enhanced_crossmodal_clip_forward.3} parent=0 // pred_fallthru
    _
  %v14 = vld [vmem:[%s0] sm:$0xff]
  %v15 = vpack.c.bf16 %v14, %v14
  %v16 = vld [vmem:[%s1] sm:$0xff]
  %v17 = vpack.c.bf16 %v16, %v16
  %s18 = scalar_lea.vmem %s1, 8
  %v19 = vld [vmem:[%s18] sm:$0xff]
  %v20 = vpack.c.bf16 %v19, %v19
  %vm21 = vcmask 523264
  %v23 = vsel %vm21, %v15, 0
  %v26 = vsel %vm21, %v17, 0
  %28 = vmatprep.subr.bf16.mxu0 0
  %29 = vmatpush1.bf16.xpose.msra.mxu0 %v26
  %30 = vmatprep.subr.bf16.mxu0 0
  %31 = vmatpush1.bf16.xpose.msra.mxu0 0
  %32 = vmatprep.subr.bf16.mxu0 0
  %33 = vmatpush1.bf16.xpose.msra.mxu0 0
  %34 = vmatprep.subr.bf16.mxu0 0
  %35 = vmatpush1.bf16.xpose.msra.mxu0 0
  %36 = vmatprep.subr.bf16.mxu0 0
  %37 = vmatpush1.bf16.xpose.msra.mxu0 0
  %38 = vmatprep.subr.bf16.mxu0 0
  %39 = vmatpush1.bf16.xpose.msra.mxu0 0
  %40 = vmatprep.subr.bf16.mxu0 0
  %41 = vmatpush1.bf16.xpose.msra.mxu0 0
  %42 = vmatprep.subr.bf16.mxu0 0
  %43 = vmatpush1.bf16.xpose.msra.mxu0 0
  %44 = vmatprep.subr.bf16.mxu0 0
  %45 = vmatpush1.bf16.xpose.msra.mxu0 0
  %46 = vmatprep.subr.bf16.mxu0 0
  %47 = vmatpush1.bf16.xpose.msra.mxu0 0
  %48 = vmatprep.subr.bf16.mxu0 0
  %49 = vmatpush1.bf16.xpose.msra.mxu0 0
  %50 = vmatprep.subr.bf16.mxu0 0
  %51 = vmatpush1.bf16.xpose.msra.mxu0 0
  %52 = vmatprep.subr.bf16.mxu0 0
  %53 = vmatpush1.bf16.xpose.msra.mxu0 0
  %54 = vmatprep.subr.bf16.mxu0 0
  %55 = vmatpush1.bf16.xpose.msra.mxu0 0
  %56 = vmatprep.subr.bf16.mxu0 0
  %57 = vmatpush1.bf16.xpose.msra.mxu0 0
  %58 = vmatprep.subr.bf16.mxu0 0
  %59 = vmatpush1.bf16.xpose.msra.mxu0 0
  %60 = vmatprep.mubr.bf16.mxu0 0
  %61 = vmatmul.mubr.bf16.gmra.mrb[0].mxu0 %v23
  %v62 = vpop.f32.mrb[0].mxu0
  %v63 = vadd.f32 0.0, %v62
  %v64 = vpop.f32.mrb[0].mxu0
  %v65 = vpop.f32.mrb[0].mxu0
  %v66 = vpop.f32.mrb[0].mxu0
  %67 = vdwg.mxu0
  %vm68 = vcmask 64512
  %69 = vst.msk [vmem:[%s2] sm:$0xff] %vm68, %v63
  %v71 = vsel %vm21, %v20, 0
  %73 = vmatprep.subr.bf16.mxu0 0
  %74 = vmatpush1.bf16.xpose.msra.mxu0 %v71
  %75 = vmatprep.subr.bf16.mxu0 0
  %76 = vmatpush1.bf16.xpose.msra.mxu0 0
  %77 = vmatprep.subr.bf16.mxu0 0
  %78 = vmatpush1.bf16.xpose.msra.mxu0 0
  %79 = vmatprep.subr.bf16.mxu0 0
  %80 = vmatpush1.bf16.xpose.msra.mxu0 0
  %81 = vmatprep.subr.bf16.mxu0 0
  %82 = vmatpush1.bf16.xpose.msra.mxu0 0
  %83 = vmatprep.subr.bf16.mxu0 0
  %84 = vmatpush1.bf16.xpose.msra.mxu0 0
  %85 = vmatprep.subr.bf16.mxu0 0
  %86 = vmatpush1.bf16.xpose.msra.mxu0 0
  %87 = vmatprep.subr.bf16.mxu0 0
  %88 = vmatpush1.bf16.xpose.msra.mxu0 0
  %89 = vmatprep.subr.bf16.mxu0 0
  %90 = vmatpush1.bf16.xpose.msra.mxu0 0
  %91 = vmatprep.subr.bf16.mxu0 0
  %92 = vmatpush1.bf16.xpose.msra.mxu0 0
  %93 = vmatprep.subr.bf16.mxu0 0
  %94 = vmatpush1.bf16.xpose.msra.mxu0 0
  %95 = vmatprep.subr.bf16.mxu0 0
  %96 = vmatpush1.bf16.xpose.msra.mxu0 0
  %97 = vmatprep.subr.bf16.mxu0 0
  %98 = vmatpush1.bf16.xpose.msra.mxu0 0
  %99 = vmatprep.subr.bf16.mxu0 0
  %100 = vmatpush1.bf16.xpose.msra.mxu0 0
  %101 = vmatprep.subr.bf16.mxu0 0
  %102 = vmatpush1.bf16.xpose.msra.mxu0 0
  %103 = vmatprep.subr.bf16.mxu0 0
  %104 = vmatpush1.bf16.xpose.msra.mxu0 0
  %105 = vmatprep.mubr.bf16.mxu0 0
  %106 = vmatmul.mubr.bf16.gmra.mrb[0].mxu0 %v23
  %v107 = vpop.f32.mrb[0].mxu0
  %v108 = vadd.f32 0.0, %v107
  %v109 = vpop.f32.mrb[0].mxu0
  %v110 = vpop.f32.mrb[0].mxu0
  %v111 = vpop.f32.mrb[0].mxu0
  %112 = vdwg.mxu0
  %113 = vst.msk [vmem:[%s3] sm:$0xff] %vm68, %v108
  // Predicated region
  $region10: #{enhanced_crossmodal_clip_forward.3} parent=0 // pred_check
    _
  $region11: #{enhanced_crossmodal_clip_forward.3} parent=0 // pred_check_branch
    %115 = sbr.rel (0) target = $region13
  $region12: #{enhanced_crossmodal_clip_forward.3} parent=0 // pred_region
    _
  $region13: #{enhanced_crossmodal_clip_forward.3} parent=0 // pred_fallthru
    _
  // Predicated region
  $region14: #{enhanced_crossmodal_clip_forward.3} parent=0 // pred_check
    _
  $region15: #{enhanced_crossmodal_clip_forward.3} parent=0 // pred_check_branch
    %117 = sbr.rel (0) target = $region17
  $region16: #{enhanced_crossmodal_clip_forward.3} parent=0 // pred_region
    _
  $region17: #{enhanced_crossmodal_clip_forward.3} parent=0 // pred_fallthru
    _
  // Predicated region
  $region18: #{enhanced_crossmodal_clip_forward.3} parent=0 // pred_check
    _
  $region19: #{enhanced_crossmodal_clip_forward.3} parent=0 // pred_check_branch
    %119 = sbr.rel (0) target = $region21
  $region20: #{enhanced_crossmodal_clip_forward.3} parent=0 // pred_region
    _
  $region21: #{enhanced_crossmodal_clip_forward.3} parent=0 // pred_fallthru
    _
  // Predicated region
  $region22: #{enhanced_crossmodal_clip_forward.3} parent=0 // pred_check
    _
  $region23: #{enhanced_crossmodal_clip_forward.3} parent=0 // pred_check_branch
    %121 = sbr.rel (0) target = $region25
  $region24: #{enhanced_crossmodal_clip_forward.3} parent=0 // pred_region
    _
  $region25: #{enhanced_crossmodal_clip_forward.3} parent=0 // pred_fallthru
    _

// kernel: enhanced_crossmodal_clip_forward.2
$region0: #{enhanced_crossmodal_clip_forward.2}
  #allocation0 [shape = 'u32[]', space=smem, size = 0x4, offset = 0x4, fixed_abs, tag = 'smem constant byte address 0x4 - core index']
  #allocation1 [shape = 'u32[144,128]{1,0:T(1,128)}', space=vmem, size = 0x12000, scoped, tag = 'internal scratch']
  %s0 = inlined_call_operand.vmem [shape: bf16[3,8,128], index: 0, kind: input, shape index: {}]
  %s1 = inlined_call_operand.vmem [shape: bf16[480,192], index: 1, kind: input, shape index: {}]
  %s2 = inlined_call_operand.vmem [shape: f32[15,192], index: 2, kind: input, shape index: {}]
  %s3 = inlined_call_operand.vmem [shape: f32[8,256], index: 3, kind: output, shape index: {0}]
  %s4 = inlined_call_operand.vmem [shape: f32[8,64], index: 4, kind: output, shape index: {1}]
  %s5 = inlined_call_operand.vmem [shape: f32[2,8,64], index: 5, kind: output, shape index: {2}]
  %6 = xla_tuple %s3, %s4, %s5
  %s7 = sld [smem:[#allocation0]]
  $region38: #{enhanced_crossmodal_clip_forward.2} parent=0
    _
  %s9 = ssub.s32 1, %s7
  %s10 = scalar_select 0, %s9, %s7
  // Predicated region
  $region2: #{enhanced_crossmodal_clip_forward.2} parent=0 // pred_check
    _
  $region3: #{enhanced_crossmodal_clip_forward.2} parent=0 // pred_check_branch
    %12 = sbr.rel (0) target = $region5
  $region4: #{enhanced_crossmodal_clip_forward.2} parent=0 // pred_region
    _
  $region5: #{enhanced_crossmodal_clip_forward.2} parent=0 // pred_fallthru
    _
  // Predicated region
  $region6: #{enhanced_crossmodal_clip_forward.2} parent=0 // pred_check
    _
  $region7: #{enhanced_crossmodal_clip_forward.2} parent=0 // pred_check_branch
    %14 = sbr.rel (0) target = $region9
  $region8: #{enhanced_crossmodal_clip_forward.2} parent=0 // pred_region
    _
  $region9: #{enhanced_crossmodal_clip_forward.2} parent=0 // pred_fallthru
    _
  // Predicated region
  $region10: #{enhanced_crossmodal_clip_forward.2} parent=0 // pred_check
    _
  $region11: #{enhanced_crossmodal_clip_forward.2} parent=0 // pred_check_branch
    %16 = sbr.rel (0) target = $region13
  $region12: #{enhanced_crossmodal_clip_forward.2} parent=0 // pred_region
    _
  $region13: #{enhanced_crossmodal_clip_forward.2} parent=0 // pred_fallthru
    _
  %v18 = vld [vmem:[%s0] sm:$0xf]
  %s19 = scalar_lea.vmem %s0, 4
  %v20 = vld [vmem:[%s19] sm:$0xf]
  %s21 = scalar_lea.vmem %s0, 8
  %v22 = vld [vmem:[%s21] sm:$0xf]
  %v24 = vunpack.c.l.b16 %v20
  %v25 = vpack.c.b16 %v24, %v24
  %vm26 = vcmask 1043456
  %v29 = vsel %vm26, %v18, %v25
  %v31 = vld [vmem:[%s1] sm:$0xf]
  %v32 = vld [vmem:[%s1 + $0x8] sm:$0xf]
  %v33 = vld [vmem:[%s1 + $0x10] sm:$0xf]
  %v34 = vld [vmem:[%s1 + $0x18] sm:$0xf]
  %v35 = vld [vmem:[%s1 + $0x20] sm:$0xf]
  %v36 = vld [vmem:[%s1 + $0x28] sm:$0xf]
  %v37 = vld [vmem:[%s1 + $0x30] sm:$0xf]
  %v38 = vld [vmem:[%s1 + $0x38] sm:$0xf]
  %v39 = vld [vmem:[%s1 + $0x40] sm:$0xf]
  %v40 = vld [vmem:[%s1 + $0x48] sm:$0xf]
  %v41 = vld [vmem:[%s1 + $0x50] sm:$0xf]
  %v42 = vld [vmem:[%s1 + $0x58] sm:$0xf]
  %v43 = vld [vmem:[%s1 + $0x60] sm:$0xf]
  %v44 = vld [vmem:[%s1 + $0x68] sm:$0xf]
  %v45 = vld [vmem:[%s1 + $0x70] sm:$0xf]
  %v46 = vld [vmem:[%s1 + $0x78] sm:$0xf]
  %v47 = vld [vmem:[%s2] ss:$0 sm:$0xff]
  %v64 = vunpack.c.l.b16 %v31
  %v65 = vunpack.c.l.b16 %v32
  %v66 = vunpack.c.l.b16 %v33
  %v67 = vunpack.c.l.b16 %v34
  %v68 = vunpack.c.l.b16 %v35
  %v69 = vunpack.c.l.b16 %v36
  %v70 = vunpack.c.l.b16 %v37
  %v71 = vunpack.c.l.b16 %v38
  %v72 = vunpack.c.l.b16 %v39
  %v73 = vunpack.c.l.b16 %v40
  %v74 = vunpack.c.l.b16 %v41
  %v75 = vunpack.c.l.b16 %v42
  %v76 = vunpack.c.l.b16 %v43
  %v77 = vunpack.c.l.b16 %v44
  %v78 = vunpack.c.l.b16 %v45
  %v79 = vunpack.c.l.b16 %v46
  %v80 = vpack.c.b16 %v65, %v64
  %v81 = vpack.c.b16 %v67, %v66
  %v82 = vpack.c.b16 %v69, %v68
  %v83 = vpack.c.b16 %v71, %v70
  %v84 = vpack.c.b16 %v73, %v72
  %v85 = vpack.c.b16 %v75, %v74
  %v86 = vpack.c.b16 %v77, %v76
  %v87 = vpack.c.b16 %v79, %v78
  %96 = vmatprep.subr.bf16.mxu0 0
  %97 = vmatpush1.bf16.msra.mxu0 %v80
  %98 = vmatprep.subr.bf16.mxu0 0
  %99 = vmatpush1.bf16.msra.mxu0 %v81
  %100 = vmatprep.subr.bf16.mxu0 0
  %101 = vmatpush1.bf16.msra.mxu0 %v82
  %102 = vmatprep.subr.bf16.mxu0 0
  %103 = vmatpush1.bf16.msra.mxu0 %v83
  %104 = vmatprep.subr.bf16.mxu0 0
  %105 = vmatpush1.bf16.msra.mxu0 %v84
  %106 = vmatprep.subr.bf16.mxu0 0
  %107 = vmatpush1.bf16.msra.mxu0 %v85
  %108 = vmatprep.subr.bf16.mxu0 0
  %109 = vmatpush1.bf16.msra.mxu0 %v86
  %110 = vmatprep.subr.bf16.mxu0 0
  %111 = vmatpush1.bf16.msra.mxu0 %v87
  %112 = vmatprep.subr.bf16.mxu0 0
  %113 = vmatpush1.bf16.msra.mxu0 0
  %114 = vmatprep.subr.bf16.mxu0 0
  %115 = vmatpush1.bf16.msra.mxu0 0
  %116 = vmatprep.subr.bf16.mxu0 0
  %117 = vmatpush1.bf16.msra.mxu0 0
  %118 = vmatprep.subr.bf16.mxu0 0
  %119 = vmatpush1.bf16.msra.mxu0 0
  %120 = vmatprep.subr.bf16.mxu0 0
  %121 = vmatpush1.bf16.msra.mxu0 0
  %122 = vmatprep.subr.bf16.mxu0 0
  %123 = vmatpush1.bf16.msra.mxu0 0
  %124 = vmatprep.subr.bf16.mxu0 0
  %125 = vmatpush1.bf16.msra.mxu0 0
  %126 = vmatprep.subr.bf16.mxu0 0
  %127 = vmatpush1.bf16.msra.mxu0 0
  %128 = vmatprep.mubr.bf16.mxu0 0
  %129 = vmatmul.mubr.bf16.gmra.mrb[0].mxu0 %v29
  %v130 = vpop.f32.mrb[0].mxu0
  %v131 = vadd.f32 %v47, %v130
  %v132 = vpop.f32.mrb[0].mxu0
  %v133 = vpop.f32.mrb[0].mxu0
  %v134 = vadd.f32 %v47, %v133
  %v135 = vpop.f32.mrb[0].mxu0
  %136 = vmatprep.mubr.bf16.mxu0 0
  %137 = vmatmul.mubr.bf16.gmra.mrb[0].mxu0 %v22
  %v138 = vpop.f32.mrb[0].mxu0
  %v139 = vadd.f32 %v47, %v138
  %v140 = vpop.f32.mrb[0].mxu0
  %v141 = vpop.f32.mrb[0].mxu0
  %v142 = vpop.f32.mrb[0].mxu0
  %143 = vdwg.mxu0
  %v144 = vmul.f32 %v131, 0.5
  %v145 = vmul.f32 %v134, 0.5
  %v146 = vmul.f32 %v139, 0.5
  %v147 = vmul.f32 %v131, 0.044715
  %v148 = vmul.f32 %v134, 0.044715
  %v149 = vmul.f32 %v139, 0.044715
  %v150 = vmul.f32 %v147, %v131
  %v151 = vmul.f32 %v148, %v134
  %v152 = vmul.f32 %v149, %v139
  %v153 = vmul.f32 %v150, %v131
  %v154 = vmul.f32 %v151, %v134
  %v155 = vmul.f32 %v152, %v139
  %v156 = vadd.f32 %v131, %v153
  %v157 = vadd.f32 %v134, %v154
  %v158 = vadd.f32 %v139, %v155
  %v159 = vmul.f32 %v156, 0.7978846
  %v160 = vmul.f32 %v157, 0.7978846
  %v161 = vmul.f32 %v158, 0.7978846
  %v162 = vtanh.pop %v159
  %v163 = vtanh.pop %v160
  %v164 = vtanh.pop %v161
  %v165 = vadd.f32 %v162, 1.0
  %v166 = vadd.f32 %v163, 1.0
  %v167 = vadd.f32 %v164, 1.0
  %v168 = vmul.f32 %v144, %v165
  %v169 = vmul.f32 %v145, %v166
  %v170 = vmul.f32 %v146, %v167
  %v171 = vpack.c.bf16 %v169, %v168
  %v172 = vpack.c.bf16 %v170, %v170
  %v173 = vld [vmem:[%s1 + $0x80] sm:$0xf]
  %v174 = vld [vmem:[%s1 + $0x88] sm:$0xf]
  %v175 = vld [vmem:[%s1 + $0x90] sm:$0xf]
  %v176 = vld [vmem:[%s1 + $0x98] sm:$0xf]
  %v177 = vld [vmem:[%s1 + $0xa0] sm:$0xf]
  %v178 = vld [vmem:[%s1 + $0xa8] sm:$0xf]
  %v179 = vld [vmem:[%s1 + $0xb0] sm:$0xf]
  %v180 = vld [vmem:[%s1 + $0xb8] sm:$0xf]
  %v181 = vld [vmem:[%s2 + $0x1] ss:$0 sm:$0xff]
  %v190 = vunpack.c.l.b16 %v173
  %v191 = vunpack.c.l.b16 %v174
  %v192 = vunpack.c.l.b16 %v175
  %v193 = vunpack.c.l.b16 %v176
  %v194 = vunpack.c.l.b16 %v177
  %v195 = vunpack.c.l.b16 %v178
  %v196 = vunpack.c.l.b16 %v179
  %v197 = vunpack.c.l.b16 %v180
  %v198 = vpack.c.b16 %v191, %v190
  %v199 = vpack.c.b16 %v193, %v192
  %v200 = vpack.c.b16 %v195, %v194
  %v201 = vpack.c.b16 %v197, %v196
  %vm206 = vcmask 523264
  %v208 = vsel %vm206, %v171, 0
  %v211 = vsel %vm206, %v172, 0
  %213 = vmatprep.subr.bf16.mxu0 0
  %214 = vmatpush1.bf16.msra.mxu0 %v198
  %215 = vmatprep.subr.bf16.mxu0 0
  %216 = vmatpush1.bf16.msra.mxu0 %v199
  %217 = vmatprep.subr.bf16.mxu0 0
  %218 = vmatpush1.bf16.msra.mxu0 %v200
  %219 = vmatprep.subr.bf16.mxu0 0
  %220 = vmatpush1.bf16.msra.mxu0 %v201
  %221 = vmatprep.subr.bf16.mxu0 0
  %222 = vmatpush1.bf16.msra.mxu0 0
  %223 = vmatprep.subr.bf16.mxu0 0
  %224 = vmatpush1.bf16.msra.mxu0 0
  %225 = vmatprep.subr.bf16.mxu0 0
  %226 = vmatpush1.bf16.msra.mxu0 0
  %227 = vmatprep.subr.bf16.mxu0 0
  %228 = vmatpush1.bf16.msra.mxu0 0
  %229 = vmatprep.subr.bf16.mxu0 0
  %230 = vmatpush1.bf16.msra.mxu0 0
  %231 = vmatprep.subr.bf16.mxu0 0
  %232 = vmatpush1.bf16.msra.mxu0 0
  %233 = vmatprep.subr.bf16.mxu0 0
  %234 = vmatpush1.bf16.msra.mxu0 0
  %235 = vmatprep.subr.bf16.mxu0 0
  %236 = vmatpush1.bf16.msra.mxu0 0
  %237 = vmatprep.subr.bf16.mxu0 0
  %238 = vmatpush1.bf16.msra.mxu0 0
  %239 = vmatprep.subr.bf16.mxu0 0
  %240 = vmatpush1.bf16.msra.mxu0 0
  %241 = vmatprep.subr.bf16.mxu0 0
  %242 = vmatpush1.bf16.msra.mxu0 0
  %243 = vmatprep.subr.bf16.mxu0 0
  %244 = vmatpush1.bf16.msra.mxu0 0
  %245 = vmatprep.mubr.bf16.mxu0 0
  %246 = vmatmul.mubr.bf16.gmra.mrb[0].mxu0 %v208
  %v247 = vpop.f32.mrb[0].mxu0
  %v248 = vadd.f32 %v181, %v247
  %v249 = vpop.f32.mrb[0].mxu0
  %v250 = vpop.f32.mrb[0].mxu0
  %v251 = vadd.f32 %v181, %v250
  %v252 = vpop.f32.mrb[0].mxu0
  %253 = vmatprep.mubr.bf16.mxu0 0
  %254 = vmatmul.mubr.bf16.gmra.mrb[0].mxu0 %v211
  %v255 = vpop.f32.mrb[0].mxu0
  %v256 = vadd.f32 %v181, %v255
  %v257 = vpop.f32.mrb[0].mxu0
  %v258 = vpop.f32.mrb[0].mxu0
  %v259 = vpop.f32.mrb[0].mxu0
  %260 = vdwg.mxu0
  %v261 = vld [vmem:[%s2 + $0x2] ss:$0 sm:$0xff]
  %v262 = vld [vmem:[%s2 + $0x3] ss:$0 sm:$0xff]
  %v263 = vsel %vm206, %v248, 0.0
  %264 = vadd.xlane.f32.xlu0 %v263
  %v265 = vpop.xlane.xlu0 %264
  %v266 = vrcp.pop 64.0
  %v267 = vmul.f32 %v265, %v266
  %v268 = vmul.f32 %v248, %v248
  %v269 = vsel %vm206, %v268, 0.0
  %270 = vadd.xlane.f32.xlu0 %v269
  %v271 = vpop.xlane.xlu0 %270
  %v272 = vmul.f32 %v271, %v266
  %v273 = vmul.f32 %v267, %v267
  %v274 = vsub.f32 %v272, %v273
  %v275 = vmax.f32 %v274, 0.0
  %v276 = vsub.f32 %v248, %v267
  %v277 = vadd.f32 %v275, 1e-05
  %v278 = vrsqrt.pop %v277
  %v279 = vmul.f32 %v276, %v278
  %v280 = vmul.f32 %v279, %v261
  %v281 = vadd.f32 %v280, %v262
  %v282 = vld [vmem:[%s2 + $0x4] ss:$0 sm:$0xff]
  %v283 = vld [vmem:[%s2 + $0x5] ss:$0 sm:$0xff]
  %286 = vrot.lane.b32.xlu0 %v251, 64
  %v287 = vpop.permute.xlu0 %286
  %288 = vrot.lane.b32.xlu0 %v256, 64
  %v289 = vpop.permute.xlu0 %288
  %v292 = vsel %vm206, %v287, 0.0
  %293 = vadd.xlane.f32.xlu0 %v292
  %v294 = vpop.xlane.xlu0 %293
  %v295 = vsel %vm206, %v289, 0.0
  %296 = vadd.xlane.f32.xlu0 %v295
  %v297 = vpop.xlane.xlu0 %296
  %v298 = vmul.f32 %v294, %v266
  %v299 = vmul.f32 %v297, %v266
  %v300 = vmul.f32 %v251, %v251
  %v301 = vmul.f32 %v256, %v256
  %304 = vrot.lane.b32.xlu0 %v300, 64
  %v305 = vpop.permute.xlu0 %304
  %306 = vrot.lane.b32.xlu0 %v301, 64
  %v307 = vpop.permute.xlu0 %306
  %v310 = vsel %vm206, %v305, 0.0
  %311 = vadd.xlane.f32.xlu0 %v310
  %v312 = vpop.xlane.xlu0 %311
  %v313 = vsel %vm206, %v307, 0.0
  %314 = vadd.xlane.f32.xlu0 %v313
  %v315 = vpop.xlane.xlu0 %314
  %v316 = vmul.f32 %v312, %v266
  %v317 = vmul.f32 %v315, %v266
  %v318 = vmul.f32 %v298, %v298
  %v319 = vmul.f32 %v299, %v299
  %v320 = vsub.f32 %v316, %v318
  %v321 = vsub.f32 %v317, %v319
  %v322 = vmax.f32 %v320, 0.0
  %v323 = vmax.f32 %v321, 0.0
  %v324 = vsub.f32 %v251, %v298
  %v325 = vsub.f32 %v256, %v299
  %v326 = vadd.f32 %v322, 1e-05
  %v327 = vadd.f32 %v323, 1e-05
  %v328 = vrsqrt.pop %v326
  %v329 = vrsqrt.pop %v327
  %v330 = vmul.f32 %v324, %v328
  %v331 = vmul.f32 %v325, %v329
  %333 = vrot.lane.b32.xlu0 %v282, 64
  %v334 = vpop.permute.xlu0 %333
  %v336 = vmul.f32 %v330, %v334
  %v337 = vmul.f32 %v331, %v334
  %339 = vrot.lane.b32.xlu0 %v283, 64
  %v340 = vpop.permute.xlu0 %339
  %v342 = vadd.f32 %v336, %v340
  %v343 = vadd.f32 %v337, %v340
  %346 = vrot.lane.b32.xlu0 %v342, 64
  %v347 = vpop.permute.xlu0 %346
  %348 = vrot.lane.b32.xlu0 %v343, 64
  %v349 = vpop.permute.xlu0 %348
  %v352 = vpack.c.bf16 %v347, %v281
  %v353 = vpack.c.bf16 %v349, %v349
  %v354 = vld [vmem:[%s1 + $0xc0] sm:$0xff]
  %v355 = vld [vmem:[%s1 + $0xc8] sm:$0xff]
  %v356 = vld [vmem:[%s1 + $0xd0] sm:$0xff]
  %v357 = vld [vmem:[%s1 + $0xd8] sm:$0xff]
  %v358 = vld [vmem:[%s1 + $0xe0] sm:$0xff]
  %v359 = vld [vmem:[%s1 + $0xe8] sm:$0xff]
  %v360 = vld [vmem:[%s1 + $0xf0] sm:$0xff]
  %v361 = vld [vmem:[%s1 + $0xf8] sm:$0xff]
  %s362 = scalar_lea.vmem %s2, 6
  %v363 = vld [vmem:[%s362] ss:$8 sm:$0x3]
  %v365 = vlaneseq
  %v366 = vshrl.u32 %v365, 7
  %v367 = vsub.s32 0, %v366
  %v368 = vrot.slane %v363, %v367
  %v369 = vlaneseq
  %v370 = vshrl.u32 %v369, 7
  %v371 = vsub.s32 1, %v370
  %v372 = vrot.slane %v363, %v371
  %v383 = vunpack.c.l.b16 %v354
  %v384 = vunpack.c.h.b16 %v354
  %v385 = vunpack.c.l.b16 %v355
  %v386 = vunpack.c.h.b16 %v355
  %v387 = vunpack.c.l.b16 %v356
  %v388 = vunpack.c.h.b16 %v356
  %v389 = vunpack.c.l.b16 %v357
  %v390 = vunpack.c.h.b16 %v357
  %v391 = vunpack.c.l.b16 %v358
  %v392 = vunpack.c.h.b16 %v358
  %v393 = vunpack.c.l.b16 %v359
  %v394 = vunpack.c.h.b16 %v359
  %v395 = vunpack.c.l.b16 %v360
  %v396 = vunpack.c.h.b16 %v360
  %v397 = vunpack.c.l.b16 %v361
  %v398 = vunpack.c.h.b16 %v361
  %v399 = vpack.c.b16 %v385, %v383
  %v400 = vpack.c.b16 %v386, %v384
  %v401 = vpack.c.b16 %v389, %v387
  %v402 = vpack.c.b16 %v390, %v388
  %v403 = vpack.c.b16 %v393, %v391
  %v404 = vpack.c.b16 %v394, %v392
  %v405 = vpack.c.b16 %v397, %v395
  %v406 = vpack.c.b16 %v398, %v396
  %v416 = vsel %vm206, %v352, 0
  %v419 = vsel %vm206, %v353, 0
  %421 = vmatprep.subr.bf16.mxu0 %v400
  %422 = vmatpush1.bf16.msra.mxu0 %v399
  %423 = vmatprep.subr.bf16.mxu0 %v402
  %424 = vmatpush1.bf16.msra.mxu0 %v401
  %425 = vmatprep.subr.bf16.mxu0 %v404
  %426 = vmatpush1.bf16.msra.mxu0 %v403
  %427 = vmatprep.subr.bf16.mxu0 %v406
  %428 = vmatpush1.bf16.msra.mxu0 %v405
  %429 = vmatprep.subr.bf16.mxu0 0
  %430 = vmatpush1.bf16.msra.mxu0 0
  %431 = vmatprep.subr.bf16.mxu0 0
  %432 = vmatpush1.bf16.msra.mxu0 0
  %433 = vmatprep.subr.bf16.mxu0 0
  %434 = vmatpush1.bf16.msra.mxu0 0
  %435 = vmatprep.subr.bf16.mxu0 0
  %436 = vmatpush1.bf16.msra.mxu0 0
  %437 = vmatprep.subr.bf16.mxu0 0
  %438 = vmatpush1.bf16.msra.mxu0 0
  %439 = vmatprep.subr.bf16.mxu0 0
  %440 = vmatpush1.bf16.msra.mxu0 0
  %441 = vmatprep.subr.bf16.mxu0 0
  %442 = vmatpush1.bf16.msra.mxu0 0
  %443 = vmatprep.subr.bf16.mxu0 0
  %444 = vmatpush1.bf16.msra.mxu0 0
  %445 = vmatprep.subr.bf16.mxu0 0
  %446 = vmatpush1.bf16.msra.mxu0 0
  %447 = vmatprep.subr.bf16.mxu0 0
  %448 = vmatpush1.bf16.msra.mxu0 0
  %449 = vmatprep.subr.bf16.mxu0 0
  %450 = vmatpush1.bf16.msra.mxu0 0
  %451 = vmatprep.subr.bf16.mxu0 0
  %452 = vmatpush1.bf16.msra.mxu0 0
  %453 = vmatprep.mubr.bf16.mxu0 0
  %454 = vmatmul.mubr.bf16.gmra.mrb[0].mxu0 %v416
  %v455 = vpop.f32.mrb[0].mxu0
  %v456 = vadd.f32 %v368, %v455
  %v457 = vpop.f32.mrb[0].mxu0
  %v458 = vadd.f32 %v372, %v457
  %v459 = vpop.f32.mrb[0].mxu0
  %v460 = vadd.f32 %v368, %v459
  %v461 = vpop.f32.mrb[0].mxu0
  %v462 = vadd.f32 %v372, %v461
  %463 = vmatprep.mubr.bf16.mxu0 0
  %464 = vmatmul.mubr.bf16.gmra.mrb[0].mxu0 %v419
  %v465 = vpop.f32.mrb[0].mxu0
  %v466 = vadd.f32 %v368, %v465
  %v467 = vpop.f32.mrb[0].mxu0
  %v468 = vadd.f32 %v372, %v467
  %v469 = vpop.f32.mrb[0].mxu0
  %v470 = vpop.f32.mrb[0].mxu0
  %471 = vdwg.mxu0
  %475 = vrot.lane.b32.xlu0 %v456, 64
  %v476 = vpop.permute.xlu0 %475
  %477 = vrot.lane.b32.xlu0 %v460, 64
  %v478 = vpop.permute.xlu0 %477
  %479 = vrot.lane.b32.xlu0 %v466, 64
  %v480 = vpop.permute.xlu0 %479
  %v484 = vmul.f32 %v456, %v476
  %v485 = vmul.f32 %v460, %v478
  %v486 = vmul.f32 %v466, %v480
  %v487 = vsel %vm206, %v484, 0.0
  %488 = vadd.xlane.f32.xlu0 %v487
  %v489 = vpop.xlane.xlu0 %488
  %v490 = vsel %vm206, %v485, 0.0
  %491 = vadd.xlane.f32.xlu0 %v490
  %v492 = vpop.xlane.xlu0 %491
  %v493 = vsel %vm206, %v486, 0.0
  %494 = vadd.xlane.f32.xlu0 %v493
  %v495 = vpop.xlane.xlu0 %494
  %v496 = vmul.f32 %v456, %v478
  %v497 = vmul.f32 %v460, %v480
  %v498 = vmul.f32 %v466, %v476
  %v499 = vsel %vm206, %v496, 0.0
  %500 = vadd.xlane.f32.xlu0 %v499
  %v501 = vpop.xlane.xlu0 %500
  %v502 = vsel %vm206, %v497, 0.0
  %503 = vadd.xlane.f32.xlu0 %v502
  %v504 = vpop.xlane.xlu0 %503
  %v505 = vsel %vm206, %v498, 0.0
  %506 = vadd.xlane.f32.xlu0 %v505
  %v507 = vpop.xlane.xlu0 %506
  %v508 = vmul.f32 %v456, %v480
  %v509 = vmul.f32 %v460, %v476
  %v510 = vmul.f32 %v466, %v478
  %v511 = vsel %vm206, %v508, 0.0
  %512 = vadd.xlane.f32.xlu0 %v511
  %v513 = vpop.xlane.xlu0 %512
  %v514 = vsel %vm206, %v509, 0.0
  %515 = vadd.xlane.f32.xlu0 %v514
  %v516 = vpop.xlane.xlu0 %515
  %v517 = vsel %vm206, %v510, 0.0
  %518 = vadd.xlane.f32.xlu0 %v517
  %v519 = vpop.xlane.xlu0 %518
  %v520 = vmax.f32 %v489, %v501
  %v521 = vmax.f32 %v492, %v504
  %v522 = vmax.f32 %v495, %v507
  %v523 = vmax.f32 %v520, %v513
  %v524 = vmax.f32 %v521, %v516
  %v525 = vmax.f32 %v522, %v519
  %v526 = vsub.f32 %v489, %v523
  %v527 = vsub.f32 %v492, %v524
  %v528 = vsub.f32 %v495, %v525
  %v529 = vmul.f32 %v526, 1.442695
  %v530 = vpow.pop %v529
  %v531 = vmul.f32 %v527, 1.442695
  %v532 = vpow.pop %v531
  %v533 = vmul.f32 %v528, 1.442695
  %v534 = vpow.pop %v533
  %v535 = vsub.f32 %v501, %v523
  %v536 = vsub.f32 %v504, %v524
  %v537 = vsub.f32 %v507, %v525
  %v538 = vmul.f32 %v535, 1.442695
  %v539 = vpow.pop %v538
  %v540 = vmul.f32 %v536, 1.442695
  %v541 = vpow.pop %v540
  %v542 = vmul.f32 %v537, 1.442695
  %v543 = vpow.pop %v542
  %v544 = vsub.f32 %v513, %v523
  %v545 = vsub.f32 %v516, %v524
  %v546 = vsub.f32 %v519, %v525
  %v547 = vmul.f32 %v544, 1.442695
  %v548 = vpow.pop %v547
  %v549 = vmul.f32 %v545, 1.442695
  %v550 = vpow.pop %v549
  %v551 = vmul.f32 %v546, 1.442695
  %v552 = vpow.pop %v551
  %v553 = vadd.f32 %v530, %v539
  %v554 = vadd.f32 %v532, %v541
  %v555 = vadd.f32 %v534, %v543
  %v556 = vadd.f32 %v553, %v548
  %v557 = vadd.f32 %v554, %v550
  %v558 = vadd.f32 %v555, %v552
  %v559 = vrcp.pop %v556
  %v560 = vmul.f32 1.0, %v559
  %v561 = vrcp.pop %v557
  %v562 = vmul.f32 1.0, %v561
  %v563 = vrcp.pop %v558
  %v564 = vmul.f32 1.0, %v563
  %v565 = vmul.f32 %v530, %v560
  %v566 = vmul.f32 %v532, %v562
  %v567 = vmul.f32 %v534, %v564
  %v568 = vmul.f32 %v539, %v560
  %v569 = vmul.f32 %v541, %v562
  %v570 = vmul.f32 %v543, %v564
  %v571 = vmul.f32 %v548, %v560
  %v572 = vmul.f32 %v550, %v562
  %v573 = vmul.f32 %v552, %v564
  %v574 = vmul.f32 %v565, %v458
  %v575 = vmul.f32 %v566, %v462
  %v576 = vmul.f32 %v567, %v468
  %v577 = vmul.f32 %v568, %v462
  %v578 = vmul.f32 %v569, %v468
  %v579 = vmul.f32 %v570, %v458
  %v580 = vadd.f32 %v574, %v577
  %v581 = vadd.f32 %v575, %v578
  %v582 = vadd.f32 %v576, %v579
  %v583 = vmul.f32 %v571, %v468
  %v584 = vmul.f32 %v572, %v458
  %v585 = vmul.f32 %v573, %v462
  %v586 = vadd.f32 %v580, %v583
  %v587 = vadd.f32 %v581, %v584
  %v588 = vadd.f32 %v582, %v585
  %v589 = vpack.c.bf16 %v587, %v586
  %v590 = vpack.c.bf16 %v588, %v588
  %v591 = vld [vmem:[%s1 + $0x100] sm:$0xf]
  %v592 = vld [vmem:[%s1 + $0x108] sm:$0xf]
  %v593 = vld [vmem:[%s1 + $0x110] sm:$0xf]
  %v594 = vld [vmem:[%s1 + $0x118] sm:$0xf]
  %v595 = vld [vmem:[%s1 + $0x120] sm:$0xf]
  %v596 = vld [vmem:[%s1 + $0x128] sm:$0xf]
  %v597 = vld [vmem:[%s1 + $0x130] sm:$0xf]
  %v598 = vld [vmem:[%s1 + $0x138] sm:$0xf]
  %v607 = vunpack.c.l.b16 %v591
  %v608 = vunpack.c.l.b16 %v592
  %v609 = vunpack.c.l.b16 %v593
  %v610 = vunpack.c.l.b16 %v594
  %v611 = vunpack.c.l.b16 %v595
  %v612 = vunpack.c.l.b16 %v596
  %v613 = vunpack.c.l.b16 %v597
  %v614 = vunpack.c.l.b16 %v598
  %v615 = vpack.c.b16 %v608, %v607
  %v616 = vpack.c.b16 %v610, %v609
  %v617 = vpack.c.b16 %v612, %v611
  %v618 = vpack.c.b16 %v614, %v613
  %v624 = vsel %vm206, %v589, 0
  %v627 = vsel %vm206, %v590, 0
  %629 = vmatprep.subr.bf16.mxu0 0
  %630 = vmatpush1.bf16.msra.mxu0 %v615
  %631 = vmatprep.subr.bf16.mxu0 0
  %632 = vmatpush1.bf16.msra.mxu0 %v616
  %633 = vmatprep.subr.bf16.mxu0 0
  %634 = vmatpush1.bf16.msra.mxu0 %v617
  %635 = vmatprep.subr.bf16.mxu0 0
  %636 = vmatpush1.bf16.msra.mxu0 %v618
  %637 = vmatprep.subr.bf16.mxu0 0
  %638 = vmatpush1.bf16.msra.mxu0 0
  %639 = vmatprep.subr.bf16.mxu0 0
  %640 = vmatpush1.bf16.msra.mxu0 0
  %641 = vmatprep.subr.bf16.mxu0 0
  %642 = vmatpush1.bf16.msra.mxu0 0
  %643 = vmatprep.subr.bf16.mxu0 0
  %644 = vmatpush1.bf16.msra.mxu0 0
  %645 = vmatprep.subr.bf16.mxu0 0
  %646 = vmatpush1.bf16.msra.mxu0 0
  %647 = vmatprep.subr.bf16.mxu0 0
  %648 = vmatpush1.bf16.msra.mxu0 0
  %649 = vmatprep.subr.bf16.mxu0 0
  %650 = vmatpush1.bf16.msra.mxu0 0
  %651 = vmatprep.subr.bf16.mxu0 0
  %652 = vmatpush1.bf16.msra.mxu0 0
  %653 = vmatprep.subr.bf16.mxu0 0
  %654 = vmatpush1.bf16.msra.mxu0 0
  %655 = vmatprep.subr.bf16.mxu0 0
  %656 = vmatpush1.bf16.msra.mxu0 0
  %657 = vmatprep.subr.bf16.mxu0 0
  %658 = vmatpush1.bf16.msra.mxu0 0
  %659 = vmatprep.subr.bf16.mxu0 0
  %660 = vmatpush1.bf16.msra.mxu0 0
  %661 = vmatprep.mubr.bf16.mxu0 0
  %662 = vmatmul.mubr.bf16.gmra.mrb[0].mxu0 %v624
  %v663 = vpop.f32.mrb[0].mxu0
  %v664 = vadd.f32 0.0, %v663
  %v665 = vpop.f32.mrb[0].mxu0
  %v666 = vpop.f32.mrb[0].mxu0
  %v667 = vadd.f32 0.0, %v666
  %v668 = vpop.f32.mrb[0].mxu0
  %669 = vmatprep.mubr.bf16.mxu0 0
  %670 = vmatmul.mubr.bf16.gmra.mrb[0].mxu0 %v627
  %v671 = vpop.f32.mrb[0].mxu0
  %v672 = vadd.f32 0.0, %v671
  %v673 = vpop.f32.mrb[0].mxu0
  %v674 = vpop.f32.mrb[0].mxu0
  %v675 = vpop.f32.mrb[0].mxu0
  %676 = vdwg.mxu0
  %v677 = vadd.f32 %v281, %v664
  %v678 = vadd.f32 %v347, %v667
  %v679 = vadd.f32 %v349, %v672
  %v680 = vld [vmem:[%s2 + $0x7] ss:$0 sm:$0xff]
  %v681 = vadd.f32 %v677, %v680
  %v682 = vadd.f32 %v678, %v680
  %v683 = vadd.f32 %v679, %v680
  %v684 = vld [vmem:[%s2 + $0x10] ss:$0 sm:$0xff]
  %v685 = vld [vmem:[%s2 + $0x11] ss:$0 sm:$0xff]
  %v686 = vsel %vm206, %v681, 0.0
  %687 = vadd.xlane.f32.xlu0 %v686
  %v688 = vpop.xlane.xlu0 %687
  %v689 = vsel %vm206, %v682, 0.0
  %690 = vadd.xlane.f32.xlu0 %v689
  %v691 = vpop.xlane.xlu0 %690
  %v692 = vsel %vm206, %v683, 0.0
  %693 = vadd.xlane.f32.xlu0 %v692
  %v694 = vpop.xlane.xlu0 %693
  %v695 = vmul.f32 %v688, %v266
  %v696 = vmul.f32 %v691, %v266
  %v697 = vmul.f32 %v694, %v266
  %v698 = vmul.f32 %v681, %v681
  %v699 = vmul.f32 %v682, %v682
  %v700 = vmul.f32 %v683, %v683
  %v701 = vsel %vm206, %v698, 0.0
  %702 = vadd.xlane.f32.xlu0 %v701
  %v703 = vpop.xlane.xlu0 %702
  %v704 = vsel %vm206, %v699, 0.0
  %705 = vadd.xlane.f32.xlu0 %v704
  %v706 = vpop.xlane.xlu0 %705
  %v707 = vsel %vm206, %v700, 0.0
  %708 = vadd.xlane.f32.xlu0 %v707
  %v709 = vpop.xlane.xlu0 %708
  %v710 = vmul.f32 %v703, %v266
  %v711 = vmul.f32 %v706, %v266
  %v712 = vmul.f32 %v709, %v266
  %v713 = vmul.f32 %v695, %v695
  %v714 = vmul.f32 %v696, %v696
  %v715 = vmul.f32 %v697, %v697
  %v716 = vsub.f32 %v710, %v713
  %v717 = vsub.f32 %v711, %v714
  %v718 = vsub.f32 %v712, %v715
  %v719 = vmax.f32 %v716, 0.0
  %v720 = vmax.f32 %v717, 0.0
  %v721 = vmax.f32 %v718, 0.0
  %v722 = vsub.f32 %v681, %v695
  %v723 = vsub.f32 %v682, %v696
  %v724 = vsub.f32 %v683, %v697
  %v725 = vadd.f32 %v719, 1e-05
  %v726 = vadd.f32 %v720, 1e-05
  %v727 = vadd.f32 %v721, 1e-05
  %v728 = vrsqrt.pop %v725
  %v729 = vrsqrt.pop %v726
  %v730 = vrsqrt.pop %v727
  %v731 = vmul.f32 %v722, %v728
  %v732 = vmul.f32 %v723, %v729
  %v733 = vmul.f32 %v724, %v730
  %v734 = vmul.f32 %v731, %v684
  %v735 = vmul.f32 %v732, %v684
  %v736 = vmul.f32 %v733, %v684
  %v737 = vadd.f32 %v734, %v685
  %v738 = vadd.f32 %v735, %v685
  %v739 = vadd.f32 %v736, %v685
  %vm740 = vcmask 7168
  %v741 = vsel %vm740, %v565, %v568
  %vm742 = vcmask 15360
  %v743 = vsel %vm742, %v741, %v571
  %vm744 = vcmask 23552
  %v745 = vsel %vm744, %v743, %v572
  %vm746 = vcmask 31744
  %v747 = vsel %vm746, %v745, %v566
  %vm748 = vcmask 39936
  %v749 = vsel %vm748, %v747, %v569
  %vm750 = vcmask 48128
  %v751 = vsel %vm750, %v749, %v570
  %vm752 = vcmask 56320
  %v753 = vsel %vm752, %v751, %v573
  %vm754 = vcmask 64512
  %v755 = vsel %vm754, %v753, %v567
  %757 = vrot.lane.b32.xlu0 %v739, 64
  %v758 = vpop.permute.xlu0 %757
  %v760 = vsel %vm206, %v738, %v758
  %v761 = vpack.c.bf16 %v760, %v760
  %v762 = vld [vmem:[%s1 + $0x140] sm:$0xf]
  %v763 = vld [vmem:[%s1 + $0x148] sm:$0xf]
  %v764 = vld [vmem:[%s1 + $0x150] sm:$0xf]
  %v765 = vld [vmem:[%s1 + $0x158] sm:$0xf]
  %v766 = vld [vmem:[%s1 + $0x160] sm:$0xf]
  %v767 = vld [vmem:[%s1 + $0x168] sm:$0xf]
  %v768 = vld [vmem:[%s1 + $0x170] sm:$0xf]
  %v769 = vld [vmem:[%s1 + $0x178] sm:$0xf]
  %v770 = vld [vmem:[%s1 + $0x180] sm:$0xf]
  %v771 = vld [vmem:[%s1 + $0x188] sm:$0xf]
  %v772 = vld [vmem:[%s1 + $0x190] sm:$0xf]
  %v773 = vld [vmem:[%s1 + $0x198] sm:$0xf]
  %v774 = vld [vmem:[%s1 + $0x1a0] sm:$0xf]
  %v775 = vld [vmem:[%s1 + $0x1a8] sm:$0xf]
  %v776 = vld [vmem:[%s1 + $0x1b0] sm:$0xf]
  %v777 = vld [vmem:[%s1 + $0x1b8] sm:$0xf]
  %v778 = vld [vmem:[%s2 + $0x12] ss:$0 sm:$0xff]
  %v795 = vunpack.c.l.b16 %v762
  %v796 = vunpack.c.l.b16 %v763
  %v797 = vunpack.c.l.b16 %v764
  %v798 = vunpack.c.l.b16 %v765
  %v799 = vunpack.c.l.b16 %v766
  %v800 = vunpack.c.l.b16 %v767
  %v801 = vunpack.c.l.b16 %v768
  %v802 = vunpack.c.l.b16 %v769
  %v803 = vunpack.c.l.b16 %v770
  %v804 = vunpack.c.l.b16 %v771
  %v805 = vunpack.c.l.b16 %v772
  %v806 = vunpack.c.l.b16 %v773
  %v807 = vunpack.c.l.b16 %v774
  %v808 = vunpack.c.l.b16 %v775
  %v809 = vunpack.c.l.b16 %v776
  %v810 = vunpack.c.l.b16 %v777
  %v811 = vpack.c.b16 %v796, %v795
  %v812 = vpack.c.b16 %v798, %v797
  %v813 = vpack.c.b16 %v800, %v799
  %v814 = vpack.c.b16 %v802, %v801
  %v815 = vpack.c.b16 %v804, %v803
  %v816 = vpack.c.b16 %v806, %v805
  %v817 = vpack.c.b16 %v808, %v807
  %v818 = vpack.c.b16 %v810, %v809
  %827 = vmatprep.subr.bf16.mxu0 0
  %828 = vmatpush1.bf16.msra.mxu0 %v811
  %829 = vmatprep.subr.bf16.mxu0 0
  %830 = vmatpush1.bf16.msra.mxu0 %v812
  %831 = vmatprep.subr.bf16.mxu0 0
  %832 = vmatpush1.bf16.msra.mxu0 %v813
  %833 = vmatprep.subr.bf16.mxu0 0
  %834 = vmatpush1.bf16.msra.mxu0 %v814
  %835 = vmatprep.subr.bf16.mxu0 0
  %836 = vmatpush1.bf16.msra.mxu0 %v815
  %837 = vmatprep.subr.bf16.mxu0 0
  %838 = vmatpush1.bf16.msra.mxu0 %v816
  %839 = vmatprep.subr.bf16.mxu0 0
  %840 = vmatpush1.bf16.msra.mxu0 %v817
  %841 = vmatprep.subr.bf16.mxu0 0
  %842 = vmatpush1.bf16.msra.mxu0 %v818
  %843 = vmatprep.subr.bf16.mxu0 0
  %844 = vmatpush1.bf16.msra.mxu0 0
  %845 = vmatprep.subr.bf16.mxu0 0
  %846 = vmatpush1.bf16.msra.mxu0 0
  %847 = vmatprep.subr.bf16.mxu0 0
  %848 = vmatpush1.bf16.msra.mxu0 0
  %849 = vmatprep.subr.bf16.mxu0 0
  %850 = vmatpush1.bf16.msra.mxu0 0
  %851 = vmatprep.subr.bf16.mxu0 0
  %852 = vmatpush1.bf16.msra.mxu0 0
  %853 = vmatprep.subr.bf16.mxu0 0
  %854 = vmatpush1.bf16.msra.mxu0 0
  %855 = vmatprep.subr.bf16.mxu0 0
  %856 = vmatpush1.bf16.msra.mxu0 0
  %857 = vmatprep.subr.bf16.mxu0 0
  %858 = vmatpush1.bf16.msra.mxu0 0
  %859 = vmatprep.mubr.bf16.mxu0 0
  %860 = vmatmul.mubr.bf16.gmra.mrb[0].mxu0 %v761
  %v861 = vpop.f32.mrb[0].mxu0
  %v862 = vadd.f32 %v778, %v861
  %v863 = vpop.f32.mrb[0].mxu0
  %v864 = vpop.f32.mrb[0].mxu0
  %v865 = vpop.f32.mrb[0].mxu0
  %866 = vdwg.mxu0
  %v867 = vld [vmem:[%s2 + $0x13] ss:$0 sm:$0xff]
  %v868 = vld [vmem:[%s2 + $0x14] ss:$0 sm:$0xff]
  %vm869 = vcmask 261120
  %v870 = vsel %vm869, %v862, 0.0
  %871 = vadd.xlane.f32.xlu0 %v870
  %v872 = vpop.xlane.xlu0 %871
  %v873 = vrcp.pop 32.0
  %v874 = vmul.f32 %v872, %v873
  %v875 = vmul.f32 %v862, %v862
  %v876 = vsel %vm869, %v875, 0.0
  %877 = vadd.xlane.f32.xlu0 %v876
  %v878 = vpop.xlane.xlu0 %877
  %v879 = vmul.f32 %v878, %v873
  %v880 = vmul.f32 %v874, %v874
  %v881 = vsub.f32 %v879, %v880
  %v882 = vmax.f32 %v881, 0.0
  %v883 = vsub.f32 %v862, %v874
  %v884 = vadd.f32 %v882, 1e-05
  %v885 = vrsqrt.pop %v884
  %v886 = vmul.f32 %v883, %v885
  %v887 = vmul.f32 %v886, %v867
  %v888 = vadd.f32 %v887, %v868
  %v889 = vmul.f32 %v888, 0.5
  %v890 = vmul.f32 %v888, 0.044715
  %v891 = vmul.f32 %v890, %v888
  %v892 = vmul.f32 %v891, %v888
  %v893 = vadd.f32 %v888, %v892
  %v894 = vmul.f32 %v893, 0.7978846
  %v895 = vtanh.pop %v894
  %v896 = vadd.f32 %v895, 1.0
  %v897 = vmul.f32 %v889, %v896
  %v898 = vpack.c.bf16 %v897, %v897
  %v899 = vld [vmem:[%s1 + $0x1c0] sm:$0xf]
  %v900 = vld [vmem:[%s1 + $0x1c8] sm:$0xf]
  %v901 = vld [vmem:[%s1 + $0x1d0] sm:$0xf]
  %v902 = vld [vmem:[%s1 + $0x1d8] sm:$0xf]
  %v903 = vld [vmem:[%s2 + $0x15] ss:$0 sm:$0xff]
  %v908 = vunpack.c.l.b16 %v899
  %v909 = vunpack.c.l.b16 %v900
  %v910 = vunpack.c.l.b16 %v901
  %v911 = vunpack.c.l.b16 %v902
  %v912 = vpack.c.b16 %v909, %v908
  %v913 = vpack.c.b16 %v911, %v910
  %v917 = vsel %vm869, %v898, 0
  %919 = vmatprep.subr.bf16.mxu0 0
  %920 = vmatpush1.bf16.msra.mxu0 %v912
  %921 = vmatprep.subr.bf16.mxu0 0
  %922 = vmatpush1.bf16.msra.mxu0 %v913
  %923 = vmatprep.subr.bf16.mxu0 0
  %924 = vmatpush1.bf16.msra.mxu0 0
  %925 = vmatprep.subr.bf16.mxu0 0
  %926 = vmatpush1.bf16.msra.mxu0 0
  %927 = vmatprep.subr.bf16.mxu0 0
  %928 = vmatpush1.bf16.msra.mxu0 0
  %929 = vmatprep.subr.bf16.mxu0 0
  %930 = vmatpush1.bf16.msra.mxu0 0
  %931 = vmatprep.subr.bf16.mxu0 0
  %932 = vmatpush1.bf16.msra.mxu0 0
  %933 = vmatprep.subr.bf16.mxu0 0
  %934 = vmatpush1.bf16.msra.mxu0 0
  %935 = vmatprep.subr.bf16.mxu0 0
  %936 = vmatpush1.bf16.msra.mxu0 0
  %937 = vmatprep.subr.bf16.mxu0 0
  %938 = vmatpush1.bf16.msra.mxu0 0
  %939 = vmatprep.subr.bf16.mxu0 0
  %940 = vmatpush1.bf16.msra.mxu0 0
  %941 = vmatprep.subr.bf16.mxu0 0
  %942 = vmatpush1.bf16.msra.mxu0 0
  %943 = vmatprep.subr.bf16.mxu0 0
  %944 = vmatpush1.bf16.msra.mxu0 0
  %945 = vmatprep.subr.bf16.mxu0 0
  %946 = vmatpush1.bf16.msra.mxu0 0
  %947 = vmatprep.subr.bf16.mxu0 0
  %948 = vmatpush1.bf16.msra.mxu0 0
  %949 = vmatprep.subr.bf16.mxu0 0
  %950 = vmatpush1.bf16.msra.mxu0 0
  %951 = vmatprep.mubr.bf16.mxu0 0
  %952 = vmatmul.mubr.bf16.gmra.mrb[0].mxu0 %v917
  %v953 = vpop.f32.mrb[0].mxu0
  %v954 = vadd.f32 %v903, %v953
  %v955 = vpop.f32.mrb[0].mxu0
  %v956 = vpop.f32.mrb[0].mxu0
  %v957 = vpop.f32.mrb[0].mxu0
  %958 = vdwg.mxu0
  %v959 = vmul.f32 %v737, %v737
  %v960 = vmul.f32 %v738, %v738
  %v961 = vmul.f32 %v739, %v739
  %v962 = vsel %vm206, %v959, 0.0
  %963 = vadd.xlane.f32.xlu0 %v962
  %v964 = vpop.xlane.xlu0 %963
  %v965 = vsel %vm206, %v960, 0.0
  %966 = vadd.xlane.f32.xlu0 %v965
  %v967 = vpop.xlane.xlu0 %966
  %v968 = vsel %vm206, %v961, 0.0
  %969 = vadd.xlane.f32.xlu0 %v968
  %v970 = vpop.xlane.xlu0 %969
  %v971 = vmax.f32 %v964, 1e-24
  %v972 = vmax.f32 %v967, 1e-24
  %v973 = vmax.f32 %v970, 1e-24
  %v974 = vrsqrt.pop %v971
  %v975 = vrsqrt.pop %v972
  %v976 = vrsqrt.pop %v973
  %v977 = vmul.f32 %v737, %v974
  %v978 = vmul.f32 %v738, %v975
  %v979 = vmul.f32 %v739, %v976
  %v980 = vld [vmem:[%s2 + $0x16] ss:$0 sm:$0xff]
  %v981 = vmul.f32 %v980, 1.442695
  %v982 = vpow.pop %v981
  %984 = vset.pattern.permute.xlu0 0
  %985 = vperm.xlu0 %984, %v982
  %v986 = vpop.permute.xlu0 %985
  %v988 = vmul.f32 %v977, %v986
  %989 = vst.msk [vmem:[%s4] sm:$0xff] %vm206, %v988
  %990 = vst.msk [vmem:[%s5] sm:$0xff] %vm206, %v978
  %s991 = scalar_lea.vmem %s5, 8
  %992 = vst.msk [vmem:[%s991] sm:$0xff] %vm206, %v979
  %994 = vrot.lane.b32.xlu0 %v738, 64
  %v995 = vpop.permute.xlu0 %994
  %998 = vrot.lane.b32.xlu0 %v755, 64
  %v999 = vpop.permute.xlu0 %998
  %1002 = vrot.lane.b32.xlu0 %v954, 73
  %v1003 = vpop.permute.xlu0 %1002
  %v1005 = vsel %vm206, %v737, %v995
  %v1006 = vsel %vm206, %v739, %v999
  %vm1007 = vcmask 596992
  %v1008 = vsel %vm1007, %v1006, %v1003
  %vm1009 = vcmask 613376
  %v1010 = vsel %vm1009, %v1008, 0.0
  %1011 = vst [vmem:[%s3] sm:$0xff] %v1005
  %1012 = vst [vmem:[%s3 + $0x8] sm:$0xff] %v1010
  // Predicated region
  $region14: #{enhanced_crossmodal_clip_forward.2} parent=0 // pred_check
    _
  $region15: #{enhanced_crossmodal_clip_forward.2} parent=0 // pred_check_branch
    %1014 = sbr.rel (0) target = $region17
  $region16: #{enhanced_crossmodal_clip_forward.2} parent=0 // pred_region
    _
  $region17: #{enhanced_crossmodal_clip_forward.2} parent=0 // pred_fallthru
    _
  // Predicated region
  $region18: #{enhanced_crossmodal_clip_forward.2} parent=0 // pred_check
    _
  $region19: #{enhanced_crossmodal_clip_forward.2} parent=0 // pred_check_branch
    %1016 = sbr.rel (0) target = $region21
  $region20: #{enhanced_crossmodal_clip_forward.2} parent=0 // pred_region
    _
  $region21: #{enhanced_crossmodal_clip_forward.2} parent=0 // pred_fallthru
    _
  // Predicated region
  $region22: #{enhanced_crossmodal_clip_forward.2} parent=0 // pred_check
    _
  $region23: #{enhanced_crossmodal_clip_forward.2} parent=0 // pred_check_branch
    %1018 = sbr.rel (0) target = $region25
  $region24: #{enhanced_crossmodal_clip_forward.2} parent=0 // pred_region
    _
  $region25: #{enhanced_crossmodal_clip_forward.2} parent=0 // pred_fallthru
    _
  // Predicated region
  $region26: #{enhanced_crossmodal_clip_forward.2} parent=0 // pred_check
    _
  $region27: #{enhanced_crossmodal_clip_forward.2} parent=0 // pred_check_branch
    %1020 = sbr.rel (0) target = $region29
  $region28: #{enhanced_crossmodal_clip_forward.2} parent=0 // pred_region
    _
  $region29: #{enhanced_crossmodal_clip_forward.2} parent=0 // pred_fallthru
    _
  // Predicated region
  $region30: #{enhanced_crossmodal_clip_forward.2} parent=0 // pred_check
    _
  $region31: #{enhanced_crossmodal_clip_forward.2} parent=0 // pred_check_branch
    %1022 = sbr.rel (0) target = $region33
  $region32: #{enhanced_crossmodal_clip_forward.2} parent=0 // pred_region
    _
  $region33: #{enhanced_crossmodal_clip_forward.2} parent=0 // pred_fallthru
    _
  // Predicated region
  $region34: #{enhanced_crossmodal_clip_forward.2} parent=0 // pred_check
    _
  $region35: #{enhanced_crossmodal_clip_forward.2} parent=0 // pred_check_branch
    %1024 = sbr.rel (0) target = $region37
  $region36: #{enhanced_crossmodal_clip_forward.2} parent=0 // pred_region
    _
  $region37: #{enhanced_crossmodal_clip_forward.2} parent=0 // pred_fallthru
    _

</llo_original>
